<compile_context>
chip_gen: v7x
topology: tpu7x:2x2x1
jax: 0.10.0
libtpu: 0.0.40
codegen_flags: <defaults>
</compile_context>

<pallas_src>
import jax
import jax.numpy as jnp
from jax.experimental import pallas as pl
from jax.experimental.pallas import tpu as pltpu


def _round_up(n, m):
    return ((n + m - 1) // m) * m


# ----------------------------- Pallas kernel ---------------------------------
def tandem_kernel(
    x_ref, y_ref,                                            # (TB, x_dim), (TB, y_dim) bf16
    w1x_ref, w1y_ref, b1i_ref, w2i_ref, b2i_ref, w3i_ref, b3i_ref,   # inverse model
    w1f_ref, b1f_ref, w2f_ref, b2f_ref, w3f_ref, b3f_ref,            # forward model
    out_ref,                                                 # (TB, out_pad) f32
):
    f32 = jnp.float32
    bf16 = jnp.bfloat16

    x = x_ref[...]
    y = y_ref[...]

    # ---- inverse_model(x, y): 3-layer MLP -> pred (design parameters) ----
    # Layer 1: concat(x, y) @ W1 fused as two dots into one f32 accumulator.
    h = (jnp.dot(x, w1x_ref[...], preferred_element_type=f32)
         + jnp.dot(y, w1y_ref[...], preferred_element_type=f32)
         + b1i_ref[...])
    h = jnp.maximum(h, 0.0)
    h = jnp.dot(h.astype(bf16), w2i_ref[...], preferred_element_type=f32) + b2i_ref[...]
    h = jnp.maximum(h, 0.0)
    pred = jnp.dot(h.astype(bf16), w3i_ref[...], preferred_element_type=f32) + b3i_ref[...]

    # ---- forward_model(pred, None): 3-layer MLP -> reconstructed target ----
    h = jnp.dot(pred.astype(bf16), w1f_ref[...], preferred_element_type=f32) + b1f_ref[...]
    h = jnp.maximum(h, 0.0)
    h = jnp.dot(h.astype(bf16), w2f_ref[...], preferred_element_type=f32) + b2f_ref[...]
    h = jnp.maximum(h, 0.0)
    out = jnp.dot(h.astype(bf16), w3f_ref[...], preferred_element_type=f32) + b3f_ref[...]

    out_ref[...] = out.astype(out_ref.dtype)


# ------------------------------ wrapper ---------------------------------------
def tandem_net(x, y, padded_params, out_dim, *, block_b=128):
    """x: (B, x_dim), y: (B, y_dim). padded_params from pad_and_cast_params().
    Returns (B, out_dim) float32."""
    B = x.shape[0]
    x = x.astype(jnp.bfloat16)
    y = y.astype(jnp.bfloat16)
    weights = tuple(padded_params)
    out_pad = weights[-2].shape[-1]          # lane-padded output width (w3f cols)

    tb = min(block_b, B)
    assert B % tb == 0, "batch must be a multiple of the batch tile"
    grid = (B // tb,)

    def batch_spec(feat):
        return pl.BlockSpec((tb, feat), lambda i: (i, 0))

    def resident_spec(arr):
        # Constant block index -> weight stays VMEM-resident across grid steps.
        return pl.BlockSpec(arr.shape, lambda i: (0, 0))

    in_specs = ([batch_spec(x.shape[1]), batch_spec(y.shape[1])]
                + [resident_spec(w) for w in weights])
    out_specs = pl.BlockSpec((tb, out_pad), lambda i: (i, 0))

    (w1x, w1y, b1i, w2i, b2i, w3i, b3i, w1f, b1f, w2f, b2f, w3f, b3f) = weights
    flops = 2 * B * (
        x.shape[1] * w1x.shape[1] + y.shape[1] * w1y.shape[1]
        + w2i.shape[0] * w2i.shape[1] + w3i.shape[0] * w3i.shape[1]
        + w1f.shape[0] * w1f.shape[1] + w2f.shape[0] * w2f.shape[1]
        + w3f.shape[0] * w3f.shape[1])
    bytes_accessed = (x.size * 2 + y.size * 2 + B * out_pad * 4
                      + sum(int(w.size) * w.dtype.itemsize for w in weights))

    out_padded = pl.pallas_call(
        tandem_kernel,
        out_shape=jax.ShapeDtypeStruct((B, out_pad), jnp.float32),
        grid=grid,
        in_specs=in_specs,
        out_specs=out_specs,
        compiler_params=pltpu.CompilerParams(
            dimension_semantics=("parallel",)),     # megacore sharding on v7x
        cost_estimate=pl.CostEstimate(
            flops=flops, transcendentals=0, bytes_accessed=bytes_accessed),
    )(x, y, *weights)

    return out_padded[:, :out_dim]


# ------------------------- deterministic params --------------------------------
def make_params(key, x_dim, y_dim, hidden, design_dim, out_dim):
    def linear(k, fan_in, fan_out):
        kw, kb = jax.random.split(k)
        w = jax.random.normal(kw, (fan_in, fan_out), jnp.float32) * (1.0 / jnp.sqrt(fan_in))
        b = jax.random.normal(kb, (1, fan_out), jnp.float32) * 0.01
        return w, b

    keys = jax.random.split(key, 6)
    # inverse model: (x_dim + y_dim) -> hidden -> hidden -> design_dim
    w1i, b1i = linear(keys[0], x_dim + y_dim, hidden)
    w2i, b2i = linear(keys[1], hidden, hidden)
    w3i, b3i = linear(keys[2], hidden, design_dim)
    # forward model: design_dim -> hidden -> hidden -> out_dim
    w1f, b1f = linear(keys[3], design_dim, hidden)
    w2f, b2f = linear(keys[4], hidden, hidden)
    w3f, b3f = linear(keys[5], hidden, out_dim)
    return (w1i, b1i, w2i, b2i, w3i, b3i, w1f, b1f, w2f, b2f, w3f, b3f)


def pad_and_cast_params(params, x_dim, hidden_p, design_p, out_p):
    """Zero-pad feature dims to 128-lane multiples, split W1 into (x, y) halves,
    cast weights to bf16 (biases stay f32)."""
    (w1i, b1i, w2i, b2i, w3i, b3i, w1f, b1f, w2f, b2f, w3f, b3f) = params
    bf16 = jnp.bfloat16

    def pad_w(w, rows, cols):
        return jnp.zeros((rows, cols), jnp.float32).at[: w.shape[0], : w.shape[1]].set(w)

    def pad_b(b, cols):
        return jnp.zeros((1, cols), jnp.float32).at[:, : b.shape[1]].set(b)

    w1x, w1y = w1i[:x_dim], w1i[x_dim:]
    return (
        pad_w(w1x, w1x.shape[0], hidden_p).astype(bf16),
        pad_w(w1y, w1y.shape[0], hidden_p).astype(bf16),
        pad_b(b1i, hidden_p),
        pad_w(w2i, hidden_p, hidden_p).astype(bf16),
        pad_b(b2i, hidden_p),
        pad_w(w3i, hidden_p, design_p).astype(bf16),
        pad_b(b3i, design_p),
        pad_w(w1f, design_p, hidden_p).astype(bf16),
        pad_b(b1f, hidden_p),
        pad_w(w2f, hidden_p, hidden_p).astype(bf16),
        pad_b(b2f, hidden_p),
        pad_w(w3f, hidden_p, out_p).astype(bf16),
        pad_b(b3f, out_p),
    )


# ------------------------- pure-JAX reference -----------------------------------
def reference(x, y, params):
    """Same mixed-precision math (bf16 operands, f32 accumulate), unpadded shapes."""
    (w1i, b1i, w2i, b2i, w3i, b3i, w1f, b1f, w2f, b2f, w3f, b3f) = params
    bf16, f32 = jnp.bfloat16, jnp.float32

    def mm(a, w):
        return jnp.dot(a.astype(bf16), w.astype(bf16), preferred_element_type=f32)

    xy = jnp.concatenate([x, y], axis=-1)
    h = jax.nn.relu(mm(xy, w1i) + b1i)
    h = jax.nn.relu(mm(h, w2i) + b2i)
    pred = mm(h, w3i) + b3i
    h = jax.nn.relu(mm(pred, w1f) + b1f)
    h = jax.nn.relu(mm(h, w2f) + b2f)
    return mm(h, w3f) + b3f


# --------------------------------- main ------------------------------------------
if __name__ == "__main__":
    B, x_dim, y_dim, hidden, design_dim = 256, 16, 8, 32, 8
    out_dim = x_dim  # forward model reconstructs the target spectrum

    # lane-padded (128-multiple) feature dims used inside the kernel
    hidden_p = _round_up(hidden, 128)
    design_p = _round_up(design_dim, 128)
    out_p = _round_up(out_dim, 128)

    key = jax.random.PRNGKey(0)
    kx, ky, kp = jax.random.split(key, 3)
    x = jax.random.normal(kx, (B, x_dim), jnp.float32)
    y = jax.random.normal(ky, (B, y_dim), jnp.float32)
    params = make_params(kp, x_dim, y_dim, hidden, design_dim, out_dim)
    padded_params = pad_and_cast_params(params, x_dim, hidden_p, design_p, out_p)

    out = tandem_net(x, y, padded_params, out_dim, block_b=128)
    out = jax.block_until_ready(out)

    ref = reference(x, y, params)
    assert out.shape == (B, out_dim)
    assert jnp.allclose(out, ref, atol=2e-3, rtol=2e-3), float(jnp.max(jnp.abs(out - ref)))

    print("KERNEL_OK")
</pallas_src>

<mosaic_0001>
module attributes {stable_mosaic.version = 11 : i64} {
  func.func @tandem_kernel(%arg0: i32, %arg1: memref<128x16xbf16, #tpu.memory_space<vmem>>, %arg2: memref<128x8xbf16, #tpu.memory_space<vmem>>, %arg3: memref<16x128xbf16, #tpu.memory_space<vmem>>, %arg4: memref<8x128xbf16, #tpu.memory_space<vmem>>, %arg5: memref<1x128xf32, #tpu.memory_space<vmem>>, %arg6: memref<128x128xbf16, #tpu.memory_space<vmem>>, %arg7: memref<1x128xf32, #tpu.memory_space<vmem>>, %arg8: memref<128x128xbf16, #tpu.memory_space<vmem>>, %arg9: memref<1x128xf32, #tpu.memory_space<vmem>>, %arg10: memref<128x128xbf16, #tpu.memory_space<vmem>>, %arg11: memref<1x128xf32, #tpu.memory_space<vmem>>, %arg12: memref<128x128xbf16, #tpu.memory_space<vmem>>, %arg13: memref<1x128xf32, #tpu.memory_space<vmem>>, %arg14: memref<128x128xbf16, #tpu.memory_space<vmem>>, %arg15: memref<1x128xf32, #tpu.memory_space<vmem>>, %arg16: memref<128x128xf32, #tpu.memory_space<vmem>>) attributes {dimension_semantics = [#tpu.dimension_semantics<parallel>], iteration_bounds = array<i64: 2>, scalar_prefetch = 0 : i64, scratch_operands = 0 : i64, tpu.core_type = #tpu.core_type<tc>, window_params = [{transform_indices = @transform_0, window_bounds = array<i64: 128, 16>}, {transform_indices = @transform_1, window_bounds = array<i64: 128, 8>}, {pipeline_mode = #tpu.pipeline_mode<synchronous>, transform_indices = @transform_2, window_bounds = array<i64: 16, 128>}, {pipeline_mode = #tpu.pipeline_mode<synchronous>, transform_indices = @transform_3, window_bounds = array<i64: 8, 128>}, {pipeline_mode = #tpu.pipeline_mode<synchronous>, transform_indices = @transform_4, window_bounds = array<i64: 1, 128>}, {pipeline_mode = #tpu.pipeline_mode<synchronous>, transform_indices = @transform_5, window_bounds = array<i64: 128, 128>}, {pipeline_mode = #tpu.pipeline_mode<synchronous>, transform_indices = @transform_6, window_bounds = array<i64: 1, 128>}, {pipeline_mode = #tpu.pipeline_mode<synchronous>, transform_indices = @transform_7, window_bounds = array<i64: 128, 128>}, {pipeline_mode = #tpu.pipeline_mode<synchronous>, transform_indices = @transform_8, window_bounds = array<i64: 1, 128>}, {pipeline_mode = #tpu.pipeline_mode<synchronous>, transform_indices = @transform_9, window_bounds = array<i64: 128, 128>}, {pipeline_mode = #tpu.pipeline_mode<synchronous>, transform_indices = @transform_10, window_bounds = array<i64: 1, 128>}, {pipeline_mode = #tpu.pipeline_mode<synchronous>, transform_indices = @transform_11, window_bounds = array<i64: 128, 128>}, {pipeline_mode = #tpu.pipeline_mode<synchronous>, transform_indices = @transform_12, window_bounds = array<i64: 1, 128>}, {pipeline_mode = #tpu.pipeline_mode<synchronous>, transform_indices = @transform_13, window_bounds = array<i64: 128, 128>}, {pipeline_mode = #tpu.pipeline_mode<synchronous>, transform_indices = @transform_14, window_bounds = array<i64: 1, 128>}, {transform_indices = @transform_15, window_bounds = array<i64: 128, 128>}]} {
    %c0 = arith.constant 0 : index
    %c0_0 = arith.constant 0 : index
    %0 = vector.load %arg1[%c0, %c0_0] : memref<128x16xbf16, #tpu.memory_space<vmem>>, vector<128x16xbf16>
    %c0_1 = arith.constant 0 : index
    %c0_2 = arith.constant 0 : index
    %1 = vector.load %arg2[%c0_1, %c0_2] : memref<128x8xbf16, #tpu.memory_space<vmem>>, vector<128x8xbf16>
    %c0_3 = arith.constant 0 : index
    %c0_4 = arith.constant 0 : index
    %2 = vector.load %arg3[%c0_3, %c0_4] : memref<16x128xbf16, #tpu.memory_space<vmem>>, vector<16x128xbf16>
    %cst = arith.constant dense<0.000000e+00> : vector<128x128xf32>
    %3 = tpu.matmul %0, %2, %cst {dimension_numbers = #tpu.dot_dimension_numbers<[1], [0], [0], [1], [0, 0, 1, 1], [], []>} : vector<128x16xbf16>, vector<16x128xbf16>, vector<128x128xf32> -> vector<128x128xf32>
    %c0_5 = arith.constant 0 : index
    %c0_6 = arith.constant 0 : index
    %4 = vector.load %arg4[%c0_5, %c0_6] : memref<8x128xbf16, #tpu.memory_space<vmem>>, vector<8x128xbf16>
    %cst_7 = arith.constant dense<0.000000e+00> : vector<128x128xf32>
    %5 = tpu.matmul %1, %4, %cst_7 {dimension_numbers = #tpu.dot_dimension_numbers<[1], [0], [0], [1], [0, 0, 1, 1], [], []>} : vector<128x8xbf16>, vector<8x128xbf16>, vector<128x128xf32> -> vector<128x128xf32>
    %6 = arith.addf %3, %5 : vector<128x128xf32>
    %c0_8 = arith.constant 0 : index
    %c0_9 = arith.constant 0 : index
    %7 = vector.load %arg5[%c0_8, %c0_9] : memref<1x128xf32, #tpu.memory_space<vmem>>, vector<1x128xf32>
    %8 = vector.broadcast %7 : vector<1x128xf32> to vector<128x128xf32>
    %9 = arith.addf %6, %8 : vector<128x128xf32>
    %cst_10 = arith.constant 0.000000e+00 : f32
    %10 = vector.broadcast %cst_10 : f32 to vector<128x128xf32>
    %11 = arith.maximumf %9, %10 : vector<128x128xf32>
    %12 = arith.truncf %11 : vector<128x128xf32> to vector<128x128xbf16>
    %c0_11 = arith.constant 0 : index
    %c0_12 = arith.constant 0 : index
    %13 = vector.load %arg6[%c0_11, %c0_12] : memref<128x128xbf16, #tpu.memory_space<vmem>>, vector<128x128xbf16>
    %cst_13 = arith.constant dense<0.000000e+00> : vector<128x128xf32>
    %14 = tpu.matmul %12, %13, %cst_13 {dimension_numbers = #tpu.dot_dimension_numbers<[1], [0], [0], [1], [0, 0, 1, 1], [], []>} : vector<128x128xbf16>, vector<128x128xbf16>, vector<128x128xf32> -> vector<128x128xf32>
    %c0_14 = arith.constant 0 : index
    %c0_15 = arith.constant 0 : index
    %15 = vector.load %arg7[%c0_14, %c0_15] : memref<1x128xf32, #tpu.memory_space<vmem>>, vector<1x128xf32>
    %16 = vector.broadcast %15 : vector<1x128xf32> to vector<128x128xf32>
    %17 = arith.addf %14, %16 : vector<128x128xf32>
    %cst_16 = arith.constant 0.000000e+00 : f32
    %18 = vector.broadcast %cst_16 : f32 to vector<128x128xf32>
    %19 = arith.maximumf %17, %18 : vector<128x128xf32>
    %20 = arith.truncf %19 : vector<128x128xf32> to vector<128x128xbf16>
    %c0_17 = arith.constant 0 : index
    %c0_18 = arith.constant 0 : index
    %21 = vector.load %arg8[%c0_17, %c0_18] : memref<128x128xbf16, #tpu.memory_space<vmem>>, vector<128x128xbf16>
    %cst_19 = arith.constant dense<0.000000e+00> : vector<128x128xf32>
    %22 = tpu.matmul %20, %21, %cst_19 {dimension_numbers = #tpu.dot_dimension_numbers<[1], [0], [0], [1], [0, 0, 1, 1], [], []>} : vector<128x128xbf16>, vector<128x128xbf16>, vector<128x128xf32> -> vector<128x128xf32>
    %c0_20 = arith.constant 0 : index
    %c0_21 = arith.constant 0 : index
    %23 = vector.load %arg9[%c0_20, %c0_21] : memref<1x128xf32, #tpu.memory_space<vmem>>, vector<1x128xf32>
    %24 = vector.broadcast %23 : vector<1x128xf32> to vector<128x128xf32>
    %25 = arith.addf %22, %24 : vector<128x128xf32>
    %26 = arith.truncf %25 : vector<128x128xf32> to vector<128x128xbf16>
    %c0_22 = arith.constant 0 : index
    %c0_23 = arith.constant 0 : index
    %27 = vector.load %arg10[%c0_22, %c0_23] : memref<128x128xbf16, #tpu.memory_space<vmem>>, vector<128x128xbf16>
    %cst_24 = arith.constant dense<0.000000e+00> : vector<128x128xf32>
    %28 = tpu.matmul %26, %27, %cst_24 {dimension_numbers = #tpu.dot_dimension_numbers<[1], [0], [0], [1], [0, 0, 1, 1], [], []>} : vector<128x128xbf16>, vector<128x128xbf16>, vector<128x128xf32> -> vector<128x128xf32>
    %c0_25 = arith.constant 0 : index
    %c0_26 = arith.constant 0 : index
    %29 = vector.load %arg11[%c0_25, %c0_26] : memref<1x128xf32, #tpu.memory_space<vmem>>, vector<1x128xf32>
    %30 = vector.broadcast %29 : vector<1x128xf32> to vector<128x128xf32>
    %31 = arith.addf %28, %30 : vector<128x128xf32>
    %cst_27 = arith.constant 0.000000e+00 : f32
    %32 = vector.broadcast %cst_27 : f32 to vector<128x128xf32>
    %33 = arith.maximumf %31, %32 : vector<128x128xf32>
    %34 = arith.truncf %33 : vector<128x128xf32> to vector<128x128xbf16>
    %c0_28 = arith.constant 0 : index
    %c0_29 = arith.constant 0 : index
    %35 = vector.load %arg12[%c0_28, %c0_29] : memref<128x128xbf16, #tpu.memory_space<vmem>>, vector<128x128xbf16>
    %cst_30 = arith.constant dense<0.000000e+00> : vector<128x128xf32>
    %36 = tpu.matmul %34, %35, %cst_30 {dimension_numbers = #tpu.dot_dimension_numbers<[1], [0], [0], [1], [0, 0, 1, 1], [], []>} : vector<128x128xbf16>, vector<128x128xbf16>, vector<128x128xf32> -> vector<128x128xf32>
    %c0_31 = arith.constant 0 : index
    %c0_32 = arith.constant 0 : index
    %37 = vector.load %arg13[%c0_31, %c0_32] : memref<1x128xf32, #tpu.memory_space<vmem>>, vector<1x128xf32>
    %38 = vector.broadcast %37 : vector<1x128xf32> to vector<128x128xf32>
    %39 = arith.addf %36, %38 : vector<128x128xf32>
    %cst_33 = arith.constant 0.000000e+00 : f32
    %40 = vector.broadcast %cst_33 : f32 to vector<128x128xf32>
    %41 = arith.maximumf %39, %40 : vector<128x128xf32>
    %42 = arith.truncf %41 : vector<128x128xf32> to vector<128x128xbf16>
    %c0_34 = arith.constant 0 : index
    %c0_35 = arith.constant 0 : index
    %43 = vector.load %arg14[%c0_34, %c0_35] : memref<128x128xbf16, #tpu.memory_space<vmem>>, vector<128x128xbf16>
    %cst_36 = arith.constant dense<0.000000e+00> : vector<128x128xf32>
    %44 = tpu.matmul %42, %43, %cst_36 {dimension_numbers = #tpu.dot_dimension_numbers<[1], [0], [0], [1], [0, 0, 1, 1], [], []>} : vector<128x128xbf16>, vector<128x128xbf16>, vector<128x128xf32> -> vector<128x128xf32>
    %c0_37 = arith.constant 0 : index
    %c0_38 = arith.constant 0 : index
    %45 = vector.load %arg15[%c0_37, %c0_38] : memref<1x128xf32, #tpu.memory_space<vmem>>, vector<1x128xf32>
    %46 = vector.broadcast %45 : vector<1x128xf32> to vector<128x128xf32>
    %47 = arith.addf %44, %46 : vector<128x128xf32>
    %c0_39 = arith.constant 0 : index
    %c0_40 = arith.constant 0 : index
    %48 = vector.load %arg16[%c0_39, %c0_40] : memref<128x128xf32, #tpu.memory_space<vmem>>, vector<128x128xf32>
    tpu.vector_store %arg16[%c0_39, %c0_40], %47 {strides = array<i32>} : memref<128x128xf32, #tpu.memory_space<vmem>>, vector<128x128xf32>,
    return
  }
  func.func @transform_0(%arg0: i32) -> (i32, i32) {
    %c0_i32 = arith.constant 0 : i32
    %c0_i32_0 = arith.constant 0 : i32
    return %arg0, %c0_i32 : i32, i32
  }
  func.func @transform_1(%arg0: i32) -> (i32, i32) {
    %c0_i32 = arith.constant 0 : i32
    %c0_i32_0 = arith.constant 0 : i32
    return %arg0, %c0_i32 : i32, i32
  }
  func.func @transform_2(%arg0: i32) -> (i32, i32) {
    %c0_i32 = arith.constant 0 : i32
    %c0_i32_0 = arith.constant 0 : i32
    %c0_i32_1 = arith.constant 0 : i32
    return %c0_i32, %c0_i32_0 : i32, i32
  }
  func.func @transform_3(%arg0: i32) -> (i32, i32) {
    %c0_i32 = arith.constant 0 : i32
    %c0_i32_0 = arith.constant 0 : i32
    %c0_i32_1 = arith.constant 0 : i32
    return %c0_i32, %c0_i32_0 : i32, i32
  }
  func.func @transform_4(%arg0: i32) -> (i32, i32) {
    %c0_i32 = arith.constant 0 : i32
    %c0_i32_0 = arith.constant 0 : i32
    %c0_i32_1 = arith.constant 0 : i32
    return %c0_i32, %c0_i32_0 : i32, i32
  }
  func.func @transform_5(%arg0: i32) -> (i32, i32) {
    %c0_i32 = arith.constant 0 : i32
    %c0_i32_0 = arith.constant 0 : i32
    %c0_i32_1 = arith.constant 0 : i32
    return %c0_i32, %c0_i32_0 : i32, i32
  }
  func.func @transform_6(%arg0: i32) -> (i32, i32) {
    %c0_i32 = arith.constant 0 : i32
    %c0_i32_0 = arith.constant 0 : i32
    %c0_i32_1 = arith.constant 0 : i32
    return %c0_i32, %c0_i32_0 : i32, i32
  }
  func.func @transform_7(%arg0: i32) -> (i32, i32) {
    %c0_i32 = arith.constant 0 : i32
    %c0_i32_0 = arith.constant 0 : i32
    %c0_i32_1 = arith.constant 0 : i32
    return %c0_i32, %c0_i32_0 : i32, i32
  }
  func.func @transform_8(%arg0: i32) -> (i32, i32) {
    %c0_i32 = arith.constant 0 : i32
    %c0_i32_0 = arith.constant 0 : i32
    %c0_i32_1 = arith.constant 0 : i32
    return %c0_i32, %c0_i32_0 : i32, i32
  }
  func.func @transform_9(%arg0: i32) -> (i32, i32) {
    %c0_i32 = arith.constant 0 : i32
    %c0_i32_0 = arith.constant 0 : i32
    %c0_i32_1 = arith.constant 0 : i32
    return %c0_i32, %c0_i32_0 : i32, i32
  }
  func.func @transform_10(%arg0: i32) -> (i32, i32) {
    %c0_i32 = arith.constant 0 : i32
    %c0_i32_0 = arith.constant 0 : i32
    %c0_i32_1 = arith.constant 0 : i32
    return %c0_i32, %c0_i32_0 : i32, i32
  }
  func.func @transform_11(%arg0: i32) -> (i32, i32) {
    %c0_i32 = arith.constant 0 : i32
    %c0_i32_0 = arith.constant 0 : i32
    %c0_i32_1 = arith.constant 0 : i32
    return %c0_i32, %c0_i32_0 : i32, i32
  }
  func.func @transform_12(%arg0: i32) -> (i32, i32) {
    %c0_i32 = arith.constant 0 : i32
    %c0_i32_0 = arith.constant 0 : i32
    %c0_i32_1 = arith.constant 0 : i32
    return %c0_i32, %c0_i32_0 : i32, i32
  }
  func.func @transform_13(%arg0: i32) -> (i32, i32) {
    %c0_i32 = arith.constant 0 : i32
    %c0_i32_0 = arith.constant 0 : i32
    %c0_i32_1 = arith.constant 0 : i32
    return %c0_i32, %c0_i32_0 : i32, i32
  }
  func.func @transform_14(%arg0: i32) -> (i32, i32) {
    %c0_i32 = arith.constant 0 : i32
    %c0_i32_0 = arith.constant 0 : i32
    %c0_i32_1 = arith.constant 0 : i32
    return %c0_i32, %c0_i32_0 : i32, i32
  }
  func.func @transform_15(%arg0: i32) -> (i32, i32) {
    %c0_i32 = arith.constant 0 : i32
    %c0_i32_0 = arith.constant 0 : i32
    return %arg0, %c0_i32 : i32, i32
  }
}

</mosaic_0001>

<llo_original>
// kernel: tpu_custom_call.1
$region0: #{tpu_custom_call.1}
  #allocation0 [shape = 'u32[]', space=smem, size = 0x4, offset = 0x4, fixed_abs, tag = 'smem constant byte address 0x4 - core index']
  #allocation1 [shape = 'u32[144,128]{1,0:T(1,128)}', space=vmem, size = 0x12000, scoped, tag = 'internal scratch']
  %s0 = inlined_call_operand.vmem [shape: bf16[256,16], index: 0, kind: input, shape index: {}]
  %s1 = inlined_call_operand.vmem [shape: bf16[256,8], index: 1, kind: input, shape index: {}]
  %s2 = inlined_call_operand.hbm [shape: bf16[16,128], index: 2, kind: input, shape index: {}]
  %s3 = inlined_call_operand.hbm [shape: bf16[8,128], index: 3, kind: input, shape index: {}]
  %s4 = inlined_call_operand.vmem [shape: f32[1,128], index: 4, kind: input, shape index: {}]
  %s5 = inlined_call_operand.vmem [shape: bf16[128,128], index: 5, kind: input, shape index: {}]
  %s6 = inlined_call_operand.hbm [shape: f32[1,128], index: 6, kind: input, shape index: {}]
  %s7 = inlined_call_operand.vmem [shape: bf16[128,128], index: 7, kind: input, shape index: {}]
  %s8 = inlined_call_operand.hbm [shape: f32[1,128], index: 8, kind: input, shape index: {}]
  %s9 = inlined_call_operand.vmem [shape: bf16[128,128], index: 9, kind: input, shape index: {}]
  %s10 = inlined_call_operand.hbm [shape: f32[1,128], index: 10, kind: input, shape index: {}]
  %s11 = inlined_call_operand.vmem [shape: bf16[128,128], index: 11, kind: input, shape index: {}]
  %s12 = inlined_call_operand.vmem [shape: f32[1,128], index: 12, kind: input, shape index: {}]
  %s13 = inlined_call_operand.vmem [shape: bf16[128,128], index: 13, kind: input, shape index: {}]
  %s14 = inlined_call_operand.vmem [shape: f32[1,128], index: 14, kind: input, shape index: {}]
  %s15 = inlined_call_operand.hbm [shape: f32[256,128], index: 15, kind: output, shape index: {}]
  %s16 = sld [smem:[#allocation0]]
  $region113: #{tpu_custom_call.1} parent=0
    _
  %s18 = ssub.s32 1, %s16
  %s19 = scalar_select 0, %s18, %s16
  $region1: #{tpu_custom_call.1} parent=0
    #allocation2 [shape = 'u8[4096]{0}', space=vmem, size = 0x1000, scoped, tag = 'input window, operand 2, single buffered']
    #allocation3 [shape = 's32[2]{0}', space=sflag, size = 0x8, scoped, tag = 'scoped memory for tpu_custom_call.1']
    #allocation4 [shape = 's32[2]{0}', space=sflag, size = 0x8, scoped, tag = 'scoped memory for tpu_custom_call.1']
    #allocation5 [shape = 'u8[2048]{0}', space=vmem, size = 0x800, scoped, tag = 'input window, operand 3, single buffered']
    #allocation6 [shape = 's32[1]{0}', space=sflag, size = 0x4, scoped, tag = 'scoped memory for tpu_custom_call.1']
    #allocation7 [shape = 'u8[512]{0}', space=vmem, size = 0x400, scoped, tag = 'input window, operand 6, single buffered']
    #allocation8 [shape = 'u8[512]{0}', space=vmem, size = 0x400, scoped, tag = 'input window, operand 8, single buffered']
    #allocation9 [shape = 's32[1]{0}', space=sflag, size = 0x4, scoped, tag = 'scoped memory for tpu_custom_call.1']
    #allocation10 [shape = 'u8[512]{0}', space=vmem, size = 0x400, scoped, tag = 'input window, operand 10, single buffered']
    #allocation11 [shape = 'u8[131072]{0}', space=vmem, size = 0x20000, scoped, tag = 'output window, operand 0']
    %20 = vsyncpa [#allocation3], 0
    %21 = vsyncpa [#allocation6], 0
    %22 = vsyncpa [#allocation9], 0
    %23 = vsyncpa [#allocation4], 0
    %s24 = scalar_lea.sflag [#allocation4], 1
    %25 = vsyncpa %s24, 0
    loop: start=0, step=1, limit=4
    $region2: #{tpu_custom_call.1} parent=1 // loop_pre_header
      _
    $region3: #{tpu_custom_call.1} parent=1 // loop_header
      %s27 = sphi 0, %s31
      %p28 = scmp.ge.s32.totalorder %s27, 4
      %s37 = sphi 0, %s39
      %s40 = sphi 0, %s37
      %s41 = sphi 0, %s40
      %s57 = sphi 0, %s41
      %s63 = sphi 0, %s65
      %s66 = sphi 0, %s63
      %s67 = sphi 0, %s66
      %s83 = sphi 0, %s67
      %s87 = sphi 0, %s87
      %s89 = sphi 0, %s87
      %s90 = sphi 0, %s89
      %s104 = sphi 0, %s90
      %s108 = sphi 0, %s108
      %s110 = sphi 0, %s108
      %s111 = sphi 0, %s110
      %s125 = sphi 0, %s111
      %s129 = sphi 0, %s129
      %s131 = sphi 0, %s129
      %s132 = sphi 0, %s131
      %s146 = sphi 0, %s132
      %s150 = sphi 0, %s150
      %s152 = sphi 0, %s150
      %s153 = sphi 0, %s152
      %s167 = sphi 0, %s153
      %s171 = sphi 0, %s171
      %s173 = sphi 0, %s171
      %s174 = sphi 0, %s173
      %s188 = sphi 0, %s174
      %s192 = sphi 0, %s192
      %s194 = sphi 0, %s192
      %s195 = sphi 0, %s194
      %s209 = sphi 0, %s195
      %s213 = sphi 0, %s213
      %s215 = sphi 0, %s213
      %s216 = sphi 0, %s215
      %s230 = sphi 0, %s216
      %s234 = sphi 0, %s234
      %s236 = sphi 0, %s234
      %s237 = sphi 0, %s236
      %s251 = sphi 0, %s237
      %s255 = sphi 0, %s255
      %s257 = sphi 0, %s255
      %s258 = sphi 0, %s257
      %s272 = sphi 0, %s258
      %s276 = sphi 0, %s276
      %s278 = sphi 0, %s276
      %s279 = sphi 0, %s278
      %s293 = sphi 0, %s279
      %s297 = sphi 0, %s297
      %s299 = sphi 0, %s297
      %s300 = sphi 0, %s299
      %s314 = sphi 0, %s300
      %s318 = sphi 0, %s318
      %s320 = sphi 0, %s318
      %s321 = sphi 0, %s320
      %s335 = sphi 0, %s321
      %s339 = sphi 0, %s339
      %s341 = sphi 0, %s339
      %s342 = sphi 0, %s341
      %s356 = sphi 0, %s342
      %s362 = sphi 0, %s364
      %s365 = sphi 0, %s362
      %s366 = sphi 0, %s365
      %s382 = sphi 0, %s366
    $region4: #{tpu_custom_call.1} parent=1 // loop_header_branch
      %30 = sbr.rel (%p28) target = $region8
    $region5: #{tpu_custom_call.1} parent=1 // loop_body
      %s32 = ssub.s32 %s27, 1
      %s33 = ssub.s32 %s27, 2
      %s34 = sadd.s32 %s27, 1
      %s35 = ssub.s32 %s27, %s34
      %p36 = scmp.eq.s32.totalorder %s35, 0
      %s38 = sadd.s32 %s37, 1
      %s39 = scalar_select %p36, %s37, %s38
      %p42 = pneg %p36
      %p43 = scmp.eq.s32.totalorder %s27, 1
      %p44 = por %p42, %p43
      %p45 = scmp.ne.s32.totalorder %s37, %s40
      %p46 = scmp.eq.s32.totalorder %s27, 0
      %p47 = por %p45, %p46
      %p48 = scmp.ne.s32.totalorder %s37, %s40
      %p49 = scmp.eq.s32.totalorder %s32, 1
      %p50 = por %p48, %p49
      %p51 = scmp.ne.s32.totalorder %s40, %s41
      %p52 = scmp.eq.s32.totalorder %s32, 0
      %p53 = por %p51, %p52
      %p54 = scmp.ne.s32.totalorder %s40, %s41
      %p55 = scmp.eq.s32.totalorder %s33, 1
      %p56 = por %p54, %p55
      %p58 = scmp.ne.s32.totalorder %s41, %s57
      %p59 = scmp.eq.s32.totalorder %s33, 0
      %p60 = por %p58, %p59
      %s61 = ssub.s32 %s27, %s34
      %p62 = scmp.eq.s32.totalorder %s61, 0
      %s64 = sadd.s32 %s63, 1
      %s65 = scalar_select %p62, %s63, %s64
      %p68 = pneg %p62
      %p69 = scmp.eq.s32.totalorder %s27, 1
      %p70 = por %p68, %p69
      %p71 = scmp.ne.s32.totalorder %s63, %s66
      %p72 = scmp.eq.s32.totalorder %s27, 0
      %p73 = por %p71, %p72
      %p74 = scmp.ne.s32.totalorder %s63, %s66
      %p75 = scmp.eq.s32.totalorder %s32, 1
      %p76 = por %p74, %p75
      %p77 = scmp.ne.s32.totalorder %s66, %s67
      %p78 = scmp.eq.s32.totalorder %s32, 0
      %p79 = por %p77, %p78
      %p80 = scmp.ne.s32.totalorder %s66, %s67
      %p81 = scmp.eq.s32.totalorder %s33, 1
      %p82 = por %p80, %p81
      %p84 = scmp.ne.s32.totalorder %s67, %s83
      %p85 = scmp.eq.s32.totalorder %s33, 0
      %p86 = por %p84, %p85
      %s88 = sadd.s32 %s87, 1
      %p91 = scmp.eq.s32.totalorder %s27, 1
      %p92 = scmp.ne.s32.totalorder %s87, %s89
      %p93 = scmp.eq.s32.totalorder %s27, 0
      %p94 = por %p92, %p93
      %p95 = scmp.ne.s32.totalorder %s87, %s89
      %p96 = scmp.eq.s32.totalorder %s32, 1
      %p97 = por %p95, %p96
      %p98 = scmp.ne.s32.totalorder %s89, %s90
      %p99 = scmp.eq.s32.totalorder %s32, 0
      %p100 = por %p98, %p99
      %p101 = scmp.ne.s32.totalorder %s89, %s90
      %p102 = scmp.eq.s32.totalorder %s33, 1
      %p103 = por %p101, %p102
      %p105 = scmp.ne.s32.totalorder %s90, %s104
      %p106 = scmp.eq.s32.totalorder %s33, 0
      %p107 = por %p105, %p106
      %s109 = sadd.s32 %s108, 1
      %p112 = scmp.eq.s32.totalorder %s27, 1
      %p113 = scmp.ne.s32.totalorder %s108, %s110
      %p114 = scmp.eq.s32.totalorder %s27, 0
      %p115 = por %p113, %p114
      %p116 = scmp.ne.s32.totalorder %s108, %s110
      %p117 = scmp.eq.s32.totalorder %s32, 1
      %p118 = por %p116, %p117
      %p119 = scmp.ne.s32.totalorder %s110, %s111
      %p120 = scmp.eq.s32.totalorder %s32, 0
      %p121 = por %p119, %p120
      %p122 = scmp.ne.s32.totalorder %s110, %s111
      %p123 = scmp.eq.s32.totalorder %s33, 1
      %p124 = por %p122, %p123
      %p126 = scmp.ne.s32.totalorder %s111, %s125
      %p127 = scmp.eq.s32.totalorder %s33, 0
      %p128 = por %p126, %p127
      %s130 = sadd.s32 %s129, 1
      %p133 = scmp.eq.s32.totalorder %s27, 1
      %p134 = scmp.ne.s32.totalorder %s129, %s131
      %p135 = scmp.eq.s32.totalorder %s27, 0
      %p136 = por %p134, %p135
      %p137 = scmp.ne.s32.totalorder %s129, %s131
      %p138 = scmp.eq.s32.totalorder %s32, 1
      %p139 = por %p137, %p138
      %p140 = scmp.ne.s32.totalorder %s131, %s132
      %p141 = scmp.eq.s32.totalorder %s32, 0
      %p142 = por %p140, %p141
      %p143 = scmp.ne.s32.totalorder %s131, %s132
      %p144 = scmp.eq.s32.totalorder %s33, 1
      %p145 = por %p143, %p144
      %p147 = scmp.ne.s32.totalorder %s132, %s146
      %p148 = scmp.eq.s32.totalorder %s33, 0
      %p149 = por %p147, %p148
      %s151 = sadd.s32 %s150, 1
      %p154 = scmp.eq.s32.totalorder %s27, 1
      %p155 = scmp.ne.s32.totalorder %s150, %s152
      %p156 = scmp.eq.s32.totalorder %s27, 0
      %p157 = por %p155, %p156
      %p158 = scmp.ne.s32.totalorder %s150, %s152
      %p159 = scmp.eq.s32.totalorder %s32, 1
      %p160 = por %p158, %p159
      %p161 = scmp.ne.s32.totalorder %s152, %s153
      %p162 = scmp.eq.s32.totalorder %s32, 0
      %p163 = por %p161, %p162
      %p164 = scmp.ne.s32.totalorder %s152, %s153
      %p165 = scmp.eq.s32.totalorder %s33, 1
      %p166 = por %p164, %p165
      %p168 = scmp.ne.s32.totalorder %s153, %s167
      %p169 = scmp.eq.s32.totalorder %s33, 0
      %p170 = por %p168, %p169
      %s172 = sadd.s32 %s171, 1
      %p175 = scmp.eq.s32.totalorder %s27, 1
      %p176 = scmp.ne.s32.totalorder %s171, %s173
      %p177 = scmp.eq.s32.totalorder %s27, 0
      %p178 = por %p176, %p177
      %p179 = scmp.ne.s32.totalorder %s171, %s173
      %p180 = scmp.eq.s32.totalorder %s32, 1
      %p181 = por %p179, %p180
      %p182 = scmp.ne.s32.totalorder %s173, %s174
      %p183 = scmp.eq.s32.totalorder %s32, 0
      %p184 = por %p182, %p183
      %p185 = scmp.ne.s32.totalorder %s173, %s174
      %p186 = scmp.eq.s32.totalorder %s33, 1
      %p187 = por %p185, %p186
      %p189 = scmp.ne.s32.totalorder %s174, %s188
      %p190 = scmp.eq.s32.totalorder %s33, 0
      %p191 = por %p189, %p190
      %s193 = sadd.s32 %s192, 1
      %p196 = scmp.eq.s32.totalorder %s27, 1
      %p197 = scmp.ne.s32.totalorder %s192, %s194
      %p198 = scmp.eq.s32.totalorder %s27, 0
      %p199 = por %p197, %p198
      %p200 = scmp.ne.s32.totalorder %s192, %s194
      %p201 = scmp.eq.s32.totalorder %s32, 1
      %p202 = por %p200, %p201
      %p203 = scmp.ne.s32.totalorder %s194, %s195
      %p204 = scmp.eq.s32.totalorder %s32, 0
      %p205 = por %p203, %p204
      %p206 = scmp.ne.s32.totalorder %s194, %s195
      %p207 = scmp.eq.s32.totalorder %s33, 1
      %p208 = por %p206, %p207
      %p210 = scmp.ne.s32.totalorder %s195, %s209
      %p211 = scmp.eq.s32.totalorder %s33, 0
      %p212 = por %p210, %p211
      %s214 = sadd.s32 %s213, 1
      %p217 = scmp.eq.s32.totalorder %s27, 1
      %p218 = scmp.ne.s32.totalorder %s213, %s215
      %p219 = scmp.eq.s32.totalorder %s27, 0
      %p220 = por %p218, %p219
      %p221 = scmp.ne.s32.totalorder %s213, %s215
      %p222 = scmp.eq.s32.totalorder %s32, 1
      %p223 = por %p221, %p222
      %p224 = scmp.ne.s32.totalorder %s215, %s216
      %p225 = scmp.eq.s32.totalorder %s32, 0
      %p226 = por %p224, %p225
      %p227 = scmp.ne.s32.totalorder %s215, %s216
      %p228 = scmp.eq.s32.totalorder %s33, 1
      %p229 = por %p227, %p228
      %p231 = scmp.ne.s32.totalorder %s216, %s230
      %p232 = scmp.eq.s32.totalorder %s33, 0
      %p233 = por %p231, %p232
      %s235 = sadd.s32 %s234, 1
      %p238 = scmp.eq.s32.totalorder %s27, 1
      %p239 = scmp.ne.s32.totalorder %s234, %s236
      %p240 = scmp.eq.s32.totalorder %s27, 0
      %p241 = por %p239, %p240
      %p242 = scmp.ne.s32.totalorder %s234, %s236
      %p243 = scmp.eq.s32.totalorder %s32, 1
      %p244 = por %p242, %p243
      %p245 = scmp.ne.s32.totalorder %s236, %s237
      %p246 = scmp.eq.s32.totalorder %s32, 0
      %p247 = por %p245, %p246
      %p248 = scmp.ne.s32.totalorder %s236, %s237
      %p249 = scmp.eq.s32.totalorder %s33, 1
      %p250 = por %p248, %p249
      %p252 = scmp.ne.s32.totalorder %s237, %s251
      %p253 = scmp.eq.s32.totalorder %s33, 0
      %p254 = por %p252, %p253
      %s256 = sadd.s32 %s255, 1
      %p259 = scmp.eq.s32.totalorder %s27, 1
      %p260 = scmp.ne.s32.totalorder %s255, %s257
      %p261 = scmp.eq.s32.totalorder %s27, 0
      %p262 = por %p260, %p261
      %p263 = scmp.ne.s32.totalorder %s255, %s257
      %p264 = scmp.eq.s32.totalorder %s32, 1
      %p265 = por %p263, %p264
      %p266 = scmp.ne.s32.totalorder %s257, %s258
      %p267 = scmp.eq.s32.totalorder %s32, 0
      %p268 = por %p266, %p267
      %p269 = scmp.ne.s32.totalorder %s257, %s258
      %p270 = scmp.eq.s32.totalorder %s33, 1
      %p271 = por %p269, %p270
      %p273 = scmp.ne.s32.totalorder %s258, %s272
      %p274 = scmp.eq.s32.totalorder %s33, 0
      %p275 = por %p273, %p274
      %s277 = sadd.s32 %s276, 1
      %p280 = scmp.eq.s32.totalorder %s27, 1
      %p281 = scmp.ne.s32.totalorder %s276, %s278
      %p282 = scmp.eq.s32.totalorder %s27, 0
      %p283 = por %p281, %p282
      %p284 = scmp.ne.s32.totalorder %s276, %s278
      %p285 = scmp.eq.s32.totalorder %s32, 1
      %p286 = por %p284, %p285
      %p287 = scmp.ne.s32.totalorder %s278, %s279
      %p288 = scmp.eq.s32.totalorder %s32, 0
      %p289 = por %p287, %p288
      %p290 = scmp.ne.s32.totalorder %s278, %s279
      %p291 = scmp.eq.s32.totalorder %s33, 1
      %p292 = por %p290, %p291
      %p294 = scmp.ne.s32.totalorder %s279, %s293
      %p295 = scmp.eq.s32.totalorder %s33, 0
      %p296 = por %p294, %p295
      %s298 = sadd.s32 %s297, 1
      %p301 = scmp.eq.s32.totalorder %s27, 1
      %p302 = scmp.ne.s32.totalorder %s297, %s299
      %p303 = scmp.eq.s32.totalorder %s27, 0
      %p304 = por %p302, %p303
      %p305 = scmp.ne.s32.totalorder %s297, %s299
      %p306 = scmp.eq.s32.totalorder %s32, 1
      %p307 = por %p305, %p306
      %p308 = scmp.ne.s32.totalorder %s299, %s300
      %p309 = scmp.eq.s32.totalorder %s32, 0
      %p310 = por %p308, %p309
      %p311 = scmp.ne.s32.totalorder %s299, %s300
      %p312 = scmp.eq.s32.totalorder %s33, 1
      %p313 = por %p311, %p312
      %p315 = scmp.ne.s32.totalorder %s300, %s314
      %p316 = scmp.eq.s32.totalorder %s33, 0
      %p317 = por %p315, %p316
      %s319 = sadd.s32 %s318, 1
      %p322 = scmp.eq.s32.totalorder %s27, 1
      %p323 = scmp.ne.s32.totalorder %s318, %s320
      %p324 = scmp.eq.s32.totalorder %s27, 0
      %p325 = por %p323, %p324
      %p326 = scmp.ne.s32.totalorder %s318, %s320
      %p327 = scmp.eq.s32.totalorder %s32, 1
      %p328 = por %p326, %p327
      %p329 = scmp.ne.s32.totalorder %s320, %s321
      %p330 = scmp.eq.s32.totalorder %s32, 0
      %p331 = por %p329, %p330
      %p332 = scmp.ne.s32.totalorder %s320, %s321
      %p333 = scmp.eq.s32.totalorder %s33, 1
      %p334 = por %p332, %p333
      %p336 = scmp.ne.s32.totalorder %s321, %s335
      %p337 = scmp.eq.s32.totalorder %s33, 0
      %p338 = por %p336, %p337
      %s340 = sadd.s32 %s339, 1
      %p343 = scmp.eq.s32.totalorder %s27, 1
      %p344 = scmp.ne.s32.totalorder %s339, %s341
      %p345 = scmp.eq.s32.totalorder %s27, 0
      %p346 = por %p344, %p345
      %p347 = scmp.ne.s32.totalorder %s339, %s341
      %p348 = scmp.eq.s32.totalorder %s32, 1
      %p349 = por %p347, %p348
      %p350 = scmp.ne.s32.totalorder %s341, %s342
      %p351 = scmp.eq.s32.totalorder %s32, 0
      %p352 = por %p350, %p351
      %p353 = scmp.ne.s32.totalorder %s341, %s342
      %p354 = scmp.eq.s32.totalorder %s33, 1
      %p355 = por %p353, %p354
      %p357 = scmp.ne.s32.totalorder %s342, %s356
      %p358 = scmp.eq.s32.totalorder %s33, 0
      %p359 = por %p357, %p358
      %s360 = ssub.s32 %s27, %s34
      %p361 = scmp.eq.s32.totalorder %s360, 0
      %s363 = sadd.s32 %s362, 1
      %s364 = scalar_select %p361, %s362, %s363
      %p367 = pneg %p361
      %p368 = scmp.eq.s32.totalorder %s27, 1
      %p369 = por %p367, %p368
      %p370 = scmp.ne.s32.totalorder %s362, %s365
      %p371 = scmp.eq.s32.totalorder %s27, 0
      %p372 = por %p370, %p371
      %p373 = scmp.ne.s32.totalorder %s362, %s365
      %p374 = scmp.eq.s32.totalorder %s32, 1
      %p375 = por %p373, %p374
      %p376 = scmp.ne.s32.totalorder %s365, %s366
      %p377 = scmp.eq.s32.totalorder %s32, 0
      %p378 = por %p376, %p377
      %p379 = scmp.ne.s32.totalorder %s365, %s366
      %p380 = scmp.eq.s32.totalorder %s33, 1
      %p381 = por %p379, %p380
      %p383 = scmp.ne.s32.totalorder %s366, %s382
      %p384 = scmp.eq.s32.totalorder %s33, 0
      %p385 = por %p383, %p384
      %p386 = scmp.le.s32.totalorder 1, %s27
      %p387 = scmp.lt.s32.totalorder %s27, 3
      %p388 = pnand %p386, %p387
      %p389 = pneg %p388
      // Predicated region
      $region9: #{tpu_custom_call.1} parent=5 // pred_check
        _
      $region10: #{tpu_custom_call.1} parent=5 // pred_check_branch
        %391 = sbr.rel (%p388) target = $region12
      $region11: #{tpu_custom_call.1} parent=5 // pred_region
        %s392 = ssub.s32 %s27, 1
        // Predicated region
        $region13: #{tpu_custom_call.1} parent=11 // pred_check
          %p393 = pneg %p100
        $region14: #{tpu_custom_call.1} parent=11 // pred_check_branch
          %395 = sbr.rel (%p393) target = $region16
        $region15: #{tpu_custom_call.1} parent=11 // pred_region
          %s397 = ssub.s32 128, 128
          %398 = vsyncadd [#allocation3], %s397
          %s399 = sshll.u32 [#allocation2], 4
          %s400 = int_to_ptr.vmem [resolvable:$true] %s399
          %405 = dma.hbm_to_vmem [thread:$0]  %s2, 128, %s400, [#allocation3], 64, 64, 4
        $region16: #{tpu_custom_call.1} parent=11 // pred_fallthru
          _
        // Predicated region
        $region17: #{tpu_custom_call.1} parent=11 // pred_check
          %p406 = pneg %p121
        $region18: #{tpu_custom_call.1} parent=11 // pred_check_branch
          %408 = sbr.rel (%p406) target = $region20
        $region19: #{tpu_custom_call.1} parent=11 // pred_region
          %s410 = ssub.s32 64, 64
          %411 = vsyncadd [#allocation6], %s410
          %s413 = sshll.u32 [#allocation5], 4
          %s414 = int_to_ptr.vmem [resolvable:$true] %s413
          %416 = dma.hbm_to_vmem [thread:$0]  %s3, 64, %s414, [#allocation6]
        $region20: #{tpu_custom_call.1} parent=11 // pred_fallthru
          _
        // Predicated region
        $region21: #{tpu_custom_call.1} parent=11 // pred_check
          %p417 = pneg %p142
        $region22: #{tpu_custom_call.1} parent=11 // pred_check_branch
          %419 = sbr.rel (%p417) target = $region24
        $region23: #{tpu_custom_call.1} parent=11 // pred_region
          _
        $region24: #{tpu_custom_call.1} parent=11 // pred_fallthru
          _
        // Predicated region
        $region25: #{tpu_custom_call.1} parent=11 // pred_check
          %p420 = pneg %p163
        $region26: #{tpu_custom_call.1} parent=11 // pred_check_branch
          %422 = sbr.rel (%p420) target = $region28
        $region27: #{tpu_custom_call.1} parent=11 // pred_region
          _
        $region28: #{tpu_custom_call.1} parent=11 // pred_fallthru
          _
        // Predicated region
        $region29: #{tpu_custom_call.1} parent=11 // pred_check
          %p423 = pneg %p184
        $region30: #{tpu_custom_call.1} parent=11 // pred_check_branch
          %425 = sbr.rel (%p423) target = $region32
        $region31: #{tpu_custom_call.1} parent=11 // pred_region
          %s427 = ssub.s32 16, 16
          %428 = vsyncadd [#allocation6], %s427
          %s430 = sshll.u32 [#allocation7], 4
          %s431 = int_to_ptr.vmem [resolvable:$true] %s430
          %433 = dma.hbm_to_vmem [thread:$0]  %s6, 16, %s431, [#allocation6]
        $region32: #{tpu_custom_call.1} parent=11 // pred_fallthru
          _
        // Predicated region
        $region33: #{tpu_custom_call.1} parent=11 // pred_check
          %p434 = pneg %p205
        $region34: #{tpu_custom_call.1} parent=11 // pred_check_branch
          %436 = sbr.rel (%p434) target = $region36
        $region35: #{tpu_custom_call.1} parent=11 // pred_region
          _
        $region36: #{tpu_custom_call.1} parent=11 // pred_fallthru
          _
        // Predicated region
        $region37: #{tpu_custom_call.1} parent=11 // pred_check
          %p437 = pneg %p226
        $region38: #{tpu_custom_call.1} parent=11 // pred_check_branch
          %439 = sbr.rel (%p437) target = $region40
        $region39: #{tpu_custom_call.1} parent=11 // pred_region
          %s441 = ssub.s32 16, 16
          %442 = vsyncadd [#allocation9], %s441
          %s444 = sshll.u32 [#allocation8], 4
          %s445 = int_to_ptr.vmem [resolvable:$true] %s444
          %447 = dma.hbm_to_vmem [thread:$0]  %s8, 16, %s445, [#allocation9]
        $region40: #{tpu_custom_call.1} parent=11 // pred_fallthru
          _
        // Predicated region
        $region41: #{tpu_custom_call.1} parent=11 // pred_check
          %p448 = pneg %p247
        $region42: #{tpu_custom_call.1} parent=11 // pred_check_branch
          %450 = sbr.rel (%p448) target = $region44
        $region43: #{tpu_custom_call.1} parent=11 // pred_region
          _
        $region44: #{tpu_custom_call.1} parent=11 // pred_fallthru
          _
        // Predicated region
        $region45: #{tpu_custom_call.1} parent=11 // pred_check
          %p451 = pneg %p268
        $region46: #{tpu_custom_call.1} parent=11 // pred_check_branch
          %453 = sbr.rel (%p451) target = $region48
        $region47: #{tpu_custom_call.1} parent=11 // pred_region
          %s455 = ssub.s32 16, 16
          %456 = vsyncadd [#allocation9], %s455
          %s458 = sshll.u32 [#allocation10], 4
          %s459 = int_to_ptr.vmem [resolvable:$true] %s458
          %461 = dma.hbm_to_vmem [thread:$0]  %s10, 16, %s459, [#allocation9]
        $region48: #{tpu_custom_call.1} parent=11 // pred_fallthru
          _
        // Predicated region
        $region49: #{tpu_custom_call.1} parent=11 // pred_check
          %p462 = pneg %p289
        $region50: #{tpu_custom_call.1} parent=11 // pred_check_branch
          %464 = sbr.rel (%p462) target = $region52
        $region51: #{tpu_custom_call.1} parent=11 // pred_region
          _
        $region52: #{tpu_custom_call.1} parent=11 // pred_fallthru
          _
        // Predicated region
        $region53: #{tpu_custom_call.1} parent=11 // pred_check
          %p465 = pneg %p310
        $region54: #{tpu_custom_call.1} parent=11 // pred_check_branch
          %467 = sbr.rel (%p465) target = $region56
        $region55: #{tpu_custom_call.1} parent=11 // pred_region
          _
        $region56: #{tpu_custom_call.1} parent=11 // pred_fallthru
          _
        // Predicated region
        $region57: #{tpu_custom_call.1} parent=11 // pred_check
          %p468 = pneg %p331
        $region58: #{tpu_custom_call.1} parent=11 // pred_check_branch
          %470 = sbr.rel (%p468) target = $region60
        $region59: #{tpu_custom_call.1} parent=11 // pred_region
          _
        $region60: #{tpu_custom_call.1} parent=11 // pred_fallthru
          _
        // Predicated region
        $region61: #{tpu_custom_call.1} parent=11 // pred_check
          %p471 = pneg %p352
        $region62: #{tpu_custom_call.1} parent=11 // pred_check_branch
          %473 = sbr.rel (%p471) target = $region64
        $region63: #{tpu_custom_call.1} parent=11 // pred_region
          _
        $region64: #{tpu_custom_call.1} parent=11 // pred_fallthru
          _
      $region12: #{tpu_custom_call.1} parent=5 // pred_fallthru
        _
      %p474 = scmp.lt.s32.totalorder %s27, 2
      // Predicated region
      $region65: #{tpu_custom_call.1} parent=5 // pred_check
        %p475 = pneg %p474
      $region66: #{tpu_custom_call.1} parent=5 // pred_check_branch
        %477 = sbr.rel (%p475) target = $region68
      $region67: #{tpu_custom_call.1} parent=5 // pred_region
        // Predicated region
        $region69: #{tpu_custom_call.1} parent=67 // pred_check
          %p478 = pneg %p47
        $region70: #{tpu_custom_call.1} parent=67 // pred_check_branch
          %480 = sbr.rel (%p478) target = $region72
        $region71: #{tpu_custom_call.1} parent=67 // pred_region
          %s481 = smul.u32 16, %s27
          %p482 = scmp.lt.s32.totalorder %s481, 31
          %s483 = scalar_select %p482, %s481, 31
          %s484 = smul.addr %s483, 4
          %s485 = scalar_lea.vmem %s0, %s484
          %s486 = smul.u32 16, %s27
        $region72: #{tpu_custom_call.1} parent=67 // pred_fallthru
          _
        // Predicated region
        $region73: #{tpu_custom_call.1} parent=67 // pred_check
          %p487 = pneg %p73
        $region74: #{tpu_custom_call.1} parent=67 // pred_check_branch
          %489 = sbr.rel (%p487) target = $region76
        $region75: #{tpu_custom_call.1} parent=67 // pred_region
          %s490 = smul.u32 16, %s27
          %p491 = scmp.lt.s32.totalorder %s490, 31
          %s492 = scalar_select %p491, %s490, 31
          %s493 = smul.addr %s492, 4
          %s494 = scalar_lea.vmem %s1, %s493
          %s495 = smul.u32 16, %s27
        $region76: #{tpu_custom_call.1} parent=67 // pred_fallthru
          _
      $region68: #{tpu_custom_call.1} parent=5 // pred_fallthru
        _
      %p496 = scmp.le.s32.totalorder 1, %s27
      %p497 = scmp.lt.s32.totalorder %s27, 3
      %p498 = pnand %p496, %p497
      %p499 = pneg %p498
      // Predicated region
      $region77: #{tpu_custom_call.1} parent=5 // pred_check
        _
      $region78: #{tpu_custom_call.1} parent=5 // pred_check_branch
        %501 = sbr.rel (%p498) target = $region80
      $region79: #{tpu_custom_call.1} parent=5 // pred_region
        %s502 = ssub.s32 %s27, 1
        // Predicated region
        $region81: #{tpu_custom_call.1} parent=79 // pred_check
          %p503 = pneg %p100
        $region82: #{tpu_custom_call.1} parent=79 // pred_check_branch
          %505 = sbr.rel (%p503) target = $region84
        $region83: #{tpu_custom_call.1} parent=79 // pred_region
          %506 = dma.done [#allocation3], 128
        $region84: #{tpu_custom_call.1} parent=79 // pred_fallthru
          _
        // Predicated region
        $region85: #{tpu_custom_call.1} parent=79 // pred_check
          %p507 = pneg %p121
        $region86: #{tpu_custom_call.1} parent=79 // pred_check_branch
          %509 = sbr.rel (%p507) target = $region88
        $region87: #{tpu_custom_call.1} parent=79 // pred_region
          %510 = dma.done [#allocation6], 64
        $region88: #{tpu_custom_call.1} parent=79 // pred_fallthru
          _
        // Predicated region
        $region89: #{tpu_custom_call.1} parent=79 // pred_check
          %p511 = pneg %p184
        $region90: #{tpu_custom_call.1} parent=79 // pred_check_branch
          %513 = sbr.rel (%p511) target = $region92
        $region91: #{tpu_custom_call.1} parent=79 // pred_region
          %514 = dma.done [#allocation6], 16
        $region92: #{tpu_custom_call.1} parent=79 // pred_fallthru
          _
        // Predicated region
        $region93: #{tpu_custom_call.1} parent=79 // pred_check
          %p515 = pneg %p226
        $region94: #{tpu_custom_call.1} parent=79 // pred_check_branch
          %517 = sbr.rel (%p515) target = $region96
        $region95: #{tpu_custom_call.1} parent=79 // pred_region
          %518 = dma.done [#allocation9], 16
        $region96: #{tpu_custom_call.1} parent=79 // pred_fallthru
          _
        // Predicated region
        $region97: #{tpu_custom_call.1} parent=79 // pred_check
          %p519 = pneg %p268
        $region98: #{tpu_custom_call.1} parent=79 // pred_check_branch
          %521 = sbr.rel (%p519) target = $region100
        $region99: #{tpu_custom_call.1} parent=79 // pred_region
          %522 = dma.done [#allocation9], 16
        $region100: #{tpu_custom_call.1} parent=79 // pred_fallthru
          _
        %s523 = smul.u32 16, %s32
        %p524 = scmp.lt.s32.totalorder %s523, 31
        %s525 = scalar_select %p524, %s523, 31
        %s526 = smul.addr %s525, 4
        %s527 = scalar_lea.vmem %s0, %s526
        %p528 = pneg %p53
        %p529 = pneg %p50
        %s530 = smul.u32 16, %s32
        %p531 = scmp.lt.s32.totalorder %s530, 31
        %s532 = scalar_select %p531, %s530, 31
        %s533 = smul.addr %s532, 4
        %s534 = scalar_lea.vmem %s1, %s533
        %p535 = pneg %p79
        %p536 = pneg %p76
        %p537 = pneg %p100
        %p538 = pneg %p97
        %p539 = pneg %p121
        %p540 = pneg %p118
        %p541 = pneg %p142
        %p542 = pneg %p139
        %p543 = pneg %p163
        %p544 = pneg %p160
        %p545 = pneg %p184
        %p546 = pneg %p181
        %p547 = pneg %p205
        %p548 = pneg %p202
        %p549 = pneg %p226
        %p550 = pneg %p223
        %p551 = pneg %p247
        %p552 = pneg %p244
        %p553 = pneg %p268
        %p554 = pneg %p265
        %p555 = pneg %p289
        %p556 = pneg %p286
        %p557 = pneg %p310
        %p558 = pneg %p307
        %p559 = pneg %p331
        %p560 = pneg %p328
        %p561 = pneg %p352
        %p562 = pneg %p349
        %p563 = pneg %p378
        %p564 = pneg %p375
        %s565 = sand.u32 %s365, 1
        %s566 = scalar_lea.sflag [#allocation4], %s565
        %s567 = sand.u32 %s365, 1
        %s568 = smul.addr %s567, 128
        %s569 = scalar_lea.vmem [#allocation11], %s568
        %s570 = smul.u32 16, %s32
        %p571 = scmp.lt.s32.totalorder %s570, 31
        %s572 = scalar_select %p571, %s570, 31
        %s573 = smul.addr %s572, 4
        %s574 = scalar_lea.vmem %s0, %s573
        %s575 = smul.u32 16, %s32
        %s576 = smul.u32 16, %s32
        %p577 = scmp.lt.s32.totalorder %s576, 31
        %s578 = scalar_select %p577, %s576, 31
        %s579 = smul.addr %s578, 4
        %s580 = scalar_lea.vmem %s1, %s579
        %s581 = smul.u32 16, %s32
        %s582 = smul.u32 16, %s32
        %v584 = vld [vmem:[%s574] sm:$0xf]
        %v585 = vld [vmem:[%s574 + $0x4] sm:$0xf]
        %v586 = vld [vmem:[%s574 + $0x8] sm:$0xf]
        %v587 = vld [vmem:[%s574 + $0xc] sm:$0xf]
        %v588 = vld [vmem:[%s574 + $0x10] sm:$0xf]
        %v589 = vld [vmem:[%s574 + $0x14] sm:$0xf]
        %v590 = vld [vmem:[%s574 + $0x18] sm:$0xf]
        %v591 = vld [vmem:[%s574 + $0x1c] sm:$0xf]
        %v592 = vld [vmem:[%s574 + $0x20] sm:$0xf]
        %v593 = vld [vmem:[%s574 + $0x24] sm:$0xf]
        %v594 = vld [vmem:[%s574 + $0x28] sm:$0xf]
        %v595 = vld [vmem:[%s574 + $0x2c] sm:$0xf]
        %v596 = vld [vmem:[%s574 + $0x30] sm:$0xf]
        %v597 = vld [vmem:[%s574 + $0x34] sm:$0xf]
        %v598 = vld [vmem:[%s574 + $0x38] sm:$0xf]
        %v599 = vld [vmem:[%s574 + $0x3c] sm:$0xf]
        %v600 = vld [vmem:[%s580] sm:$0xf]
        %v601 = vld [vmem:[%s580 + $0x4] sm:$0xf]
        %v602 = vld [vmem:[%s580 + $0x8] sm:$0xf]
        %v603 = vld [vmem:[%s580 + $0xc] sm:$0xf]
        %v604 = vld [vmem:[%s580 + $0x10] sm:$0xf]
        %v605 = vld [vmem:[%s580 + $0x14] sm:$0xf]
        %v606 = vld [vmem:[%s580 + $0x18] sm:$0xf]
        %v607 = vld [vmem:[%s580 + $0x1c] sm:$0xf]
        %v608 = vld [vmem:[%s580 + $0x20] sm:$0xf]
        %v609 = vld [vmem:[%s580 + $0x24] sm:$0xf]
        %v610 = vld [vmem:[%s580 + $0x28] sm:$0xf]
        %v611 = vld [vmem:[%s580 + $0x2c] sm:$0xf]
        %v612 = vld [vmem:[%s580 + $0x30] sm:$0xf]
        %v613 = vld [vmem:[%s580 + $0x34] sm:$0xf]
        %v614 = vld [vmem:[%s580 + $0x38] sm:$0xf]
        %v615 = vld [vmem:[%s580 + $0x3c] sm:$0xf]
        %v616 = vld [vmem:[#allocation2] sm:$0xf]
        %v617 = vld [vmem:[#allocation2 + $0x4] sm:$0xf]
        %v618 = vld [vmem:[#allocation5] sm:$0xf]
        %v635 = vunpack.c.l.b16 %v600
        %v636 = vunpack.c.l.b16 %v601
        %v637 = vunpack.c.l.b16 %v602
        %v638 = vunpack.c.l.b16 %v603
        %v639 = vunpack.c.l.b16 %v604
        %v640 = vunpack.c.l.b16 %v605
        %v641 = vunpack.c.l.b16 %v606
        %v642 = vunpack.c.l.b16 %v607
        %v643 = vunpack.c.l.b16 %v608
        %v644 = vunpack.c.l.b16 %v609
        %v645 = vunpack.c.l.b16 %v610
        %v646 = vunpack.c.l.b16 %v611
        %v647 = vunpack.c.l.b16 %v612
        %v648 = vunpack.c.l.b16 %v613
        %v649 = vunpack.c.l.b16 %v614
        %v650 = vunpack.c.l.b16 %v615
        %v651 = vpack.c.b16 %v636, %v635
        %v652 = vpack.c.b16 %v638, %v637
        %v653 = vpack.c.b16 %v640, %v639
        %v654 = vpack.c.b16 %v642, %v641
        %v655 = vpack.c.b16 %v644, %v643
        %v656 = vpack.c.b16 %v646, %v645
        %v657 = vpack.c.b16 %v648, %v647
        %v658 = vpack.c.b16 %v650, %v649
        %vm659 = vcmask 64512
        %v661 = vsel %vm659, %v651, 0
        %v664 = vsel %vm659, %v652, 0
        %v667 = vsel %vm659, %v653, 0
        %v670 = vsel %vm659, %v654, 0
        %v673 = vsel %vm659, %v655, 0
        %v676 = vsel %vm659, %v656, 0
        %v679 = vsel %vm659, %v657, 0
        %v682 = vsel %vm659, %v658, 0
        %vm684 = vcmask 1043456
        %v686 = vsel %vm684, %v618, 0
        %688 = vmatprep.subr.bf16.mxu0 0
        %689 = vmatpush1.bf16.msra.mxu0 %v686
        %690 = vmatprep.subr.bf16.mxu0 0
        %691 = vmatpush1.bf16.msra.mxu0 0
        %692 = vmatprep.subr.bf16.mxu0 0
        %693 = vmatpush1.bf16.msra.mxu0 0
        %694 = vmatprep.subr.bf16.mxu0 0
        %695 = vmatpush1.bf16.msra.mxu0 0
        %696 = vmatprep.subr.bf16.mxu0 0
        %697 = vmatpush1.bf16.msra.mxu0 0
        %698 = vmatprep.subr.bf16.mxu0 0
        %699 = vmatpush1.bf16.msra.mxu0 0
        %700 = vmatprep.subr.bf16.mxu0 0
        %701 = vmatpush1.bf16.msra.mxu0 0
        %702 = vmatprep.subr.bf16.mxu0 0
        %703 = vmatpush1.bf16.msra.mxu0 0
        %704 = vmatprep.subr.bf16.mxu0 0
        %705 = vmatpush1.bf16.msra.mxu0 0
        %706 = vmatprep.subr.bf16.mxu0 0
        %707 = vmatpush1.bf16.msra.mxu0 0
        %708 = vmatprep.subr.bf16.mxu0 0
        %709 = vmatpush1.bf16.msra.mxu0 0
        %710 = vmatprep.subr.bf16.mxu0 0
        %711 = vmatpush1.bf16.msra.mxu0 0
        %712 = vmatprep.subr.bf16.mxu0 0
        %713 = vmatpush1.bf16.msra.mxu0 0
        %714 = vmatprep.subr.bf16.mxu0 0
        %715 = vmatpush1.bf16.msra.mxu0 0
        %716 = vmatprep.subr.bf16.mxu0 0
        %717 = vmatpush1.bf16.msra.mxu0 0
        %718 = vmatprep.subr.bf16.mxu0 0
        %719 = vmatpush1.bf16.msra.mxu0 0
        %720 = vmatprep.mubr.bf16.mxu0 0
        %721 = vmatmul.mubr.bf16.gmra.mrb[0].mxu0 %v661
        %v722 = vpop.f32.mrb[0].mxu0
        %v723 = vadd.f32 0.0, %v722
        %v724 = vpop.f32.mrb[0].mxu0
        %v725 = vpop.f32.mrb[0].mxu0
        %v726 = vadd.f32 0.0, %v725
        %v727 = vpop.f32.mrb[0].mxu0
        %728 = vmatprep.mubr.bf16.mxu0 0
        %729 = vmatmul.mubr.bf16.gmra.mrb[0].mxu0 %v664
        %v730 = vpop.f32.mrb[0].mxu0
        %v731 = vadd.f32 0.0, %v730
        %v732 = vpop.f32.mrb[0].mxu0
        %v733 = vpop.f32.mrb[0].mxu0
        %v734 = vadd.f32 0.0, %v733
        %v735 = vpop.f32.mrb[0].mxu0
        %736 = vmatprep.mubr.bf16.mxu0 0
        %737 = vmatmul.mubr.bf16.gmra.mrb[0].mxu0 %v667
        %v738 = vpop.f32.mrb[0].mxu0
        %v739 = vadd.f32 0.0, %v738
        %v740 = vpop.f32.mrb[0].mxu0
        %v741 = vpop.f32.mrb[0].mxu0
        %v742 = vadd.f32 0.0, %v741
        %v743 = vpop.f32.mrb[0].mxu0
        %744 = vmatprep.mubr.bf16.mxu0 0
        %745 = vmatmul.mubr.bf16.gmra.mrb[0].mxu0 %v670
        %v746 = vpop.f32.mrb[0].mxu0
        %v747 = vadd.f32 0.0, %v746
        %v748 = vpop.f32.mrb[0].mxu0
        %v749 = vpop.f32.mrb[0].mxu0
        %v750 = vadd.f32 0.0, %v749
        %v751 = vpop.f32.mrb[0].mxu0
        %752 = vmatprep.mubr.bf16.mxu0 0
        %753 = vmatmul.mubr.bf16.gmra.mrb[0].mxu0 %v673
        %v754 = vpop.f32.mrb[0].mxu0
        %v755 = vadd.f32 0.0, %v754
        %v756 = vpop.f32.mrb[0].mxu0
        %v757 = vpop.f32.mrb[0].mxu0
        %v758 = vadd.f32 0.0, %v757
        %v759 = vpop.f32.mrb[0].mxu0
        %760 = vmatprep.mubr.bf16.mxu0 0
        %761 = vmatmul.mubr.bf16.gmra.mrb[0].mxu0 %v676
        %v762 = vpop.f32.mrb[0].mxu0
        %v763 = vadd.f32 0.0, %v762
        %v764 = vpop.f32.mrb[0].mxu0
        %v765 = vpop.f32.mrb[0].mxu0
        %v766 = vadd.f32 0.0, %v765
        %v767 = vpop.f32.mrb[0].mxu0
        %768 = vmatprep.mubr.bf16.mxu0 0
        %769 = vmatmul.mubr.bf16.gmra.mrb[0].mxu0 %v679
        %v770 = vpop.f32.mrb[0].mxu0
        %v771 = vadd.f32 0.0, %v770
        %v772 = vpop.f32.mrb[0].mxu0
        %v773 = vpop.f32.mrb[0].mxu0
        %v774 = vadd.f32 0.0, %v773
        %v775 = vpop.f32.mrb[0].mxu0
        %776 = vmatprep.mubr.bf16.mxu0 0
        %777 = vmatmul.mubr.bf16.gmra.mrb[0].mxu0 %v682
        %v778 = vpop.f32.mrb[0].mxu0
        %v779 = vadd.f32 0.0, %v778
        %v780 = vpop.f32.mrb[0].mxu0
        %v781 = vpop.f32.mrb[0].mxu0
        %v782 = vadd.f32 0.0, %v781
        %v783 = vpop.f32.mrb[0].mxu0
        %784 = vdwg.mxu0
        %v801 = vunpack.c.l.b16 %v584
        %v802 = vunpack.c.l.b16 %v585
        %v803 = vunpack.c.l.b16 %v586
        %v804 = vunpack.c.l.b16 %v587
        %v805 = vunpack.c.l.b16 %v588
        %v806 = vunpack.c.l.b16 %v589
        %v807 = vunpack.c.l.b16 %v590
        %v808 = vunpack.c.l.b16 %v591
        %v809 = vunpack.c.l.b16 %v592
        %v810 = vunpack.c.l.b16 %v593
        %v811 = vunpack.c.l.b16 %v594
        %v812 = vunpack.c.l.b16 %v595
        %v813 = vunpack.c.l.b16 %v596
        %v814 = vunpack.c.l.b16 %v597
        %v815 = vunpack.c.l.b16 %v598
        %v816 = vunpack.c.l.b16 %v599
        %v817 = vpack.c.b16 %v802, %v801
        %v818 = vpack.c.b16 %v804, %v803
        %v819 = vpack.c.b16 %v806, %v805
        %v820 = vpack.c.b16 %v808, %v807
        %v821 = vpack.c.b16 %v810, %v809
        %v822 = vpack.c.b16 %v812, %v811
        %v823 = vpack.c.b16 %v814, %v813
        %v824 = vpack.c.b16 %v816, %v815
        %v827 = vunpack.c.l.b16 %v616
        %v828 = vunpack.c.l.b16 %v617
        %v829 = vpack.c.b16 %v828, %v827
        %vm831 = vcmask 130048
        %v833 = vsel %vm831, %v817, 0
        %v836 = vsel %vm831, %v818, 0
        %v839 = vsel %vm831, %v819, 0
        %v842 = vsel %vm831, %v820, 0
        %v845 = vsel %vm831, %v821, 0
        %v848 = vsel %vm831, %v822, 0
        %v851 = vsel %vm831, %v823, 0
        %v854 = vsel %vm831, %v824, 0
        %856 = vmatprep.subr.bf16.mxu0 0
        %857 = vmatpush1.bf16.msra.mxu0 %v829
        %858 = vmatprep.subr.bf16.mxu0 0
        %859 = vmatpush1.bf16.msra.mxu0 0
        %860 = vmatprep.subr.bf16.mxu0 0
        %861 = vmatpush1.bf16.msra.mxu0 0
        %862 = vmatprep.subr.bf16.mxu0 0
        %863 = vmatpush1.bf16.msra.mxu0 0
        %864 = vmatprep.subr.bf16.mxu0 0
        %865 = vmatpush1.bf16.msra.mxu0 0
        %866 = vmatprep.subr.bf16.mxu0 0
        %867 = vmatpush1.bf16.msra.mxu0 0
        %868 = vmatprep.subr.bf16.mxu0 0
        %869 = vmatpush1.bf16.msra.mxu0 0
        %870 = vmatprep.subr.bf16.mxu0 0
        %871 = vmatpush1.bf16.msra.mxu0 0
        %872 = vmatprep.subr.bf16.mxu0 0
        %873 = vmatpush1.bf16.msra.mxu0 0
        %874 = vmatprep.subr.bf16.mxu0 0
        %875 = vmatpush1.bf16.msra.mxu0 0
        %876 = vmatprep.subr.bf16.mxu0 0
        %877 = vmatpush1.bf16.msra.mxu0 0
        %878 = vmatprep.subr.bf16.mxu0 0
        %879 = vmatpush1.bf16.msra.mxu0 0
        %880 = vmatprep.subr.bf16.mxu0 0
        %881 = vmatpush1.bf16.msra.mxu0 0
        %882 = vmatprep.subr.bf16.mxu0 0
        %883 = vmatpush1.bf16.msra.mxu0 0
        %884 = vmatprep.subr.bf16.mxu0 0
        %885 = vmatpush1.bf16.msra.mxu0 0
        %886 = vmatprep.subr.bf16.mxu0 0
        %887 = vmatpush1.bf16.msra.mxu0 0
        %888 = vmatprep.mubr.bf16.mxu0 0
        %889 = vmatmul.mubr.bf16.gmra.mrb[0].mxu0 %v833
        %v890 = vpop.f32.mrb[0].mxu0
        %v891 = vadd.f32 %v723, %v890
        %v892 = vpop.f32.mrb[0].mxu0
        %v893 = vpop.f32.mrb[0].mxu0
        %v894 = vadd.f32 %v726, %v893
        %v895 = vpop.f32.mrb[0].mxu0
        %896 = vmatprep.mubr.bf16.mxu0 0
        %897 = vmatmul.mubr.bf16.gmra.mrb[0].mxu0 %v836
        %v898 = vpop.f32.mrb[0].mxu0
        %v899 = vadd.f32 %v731, %v898
        %v900 = vpop.f32.mrb[0].mxu0
        %v901 = vpop.f32.mrb[0].mxu0
        %v902 = vadd.f32 %v734, %v901
        %v903 = vpop.f32.mrb[0].mxu0
        %904 = vmatprep.mubr.bf16.mxu0 0
        %905 = vmatmul.mubr.bf16.gmra.mrb[0].mxu0 %v839
        %v906 = vpop.f32.mrb[0].mxu0
        %v907 = vadd.f32 %v739, %v906
        %v908 = vpop.f32.mrb[0].mxu0
        %v909 = vpop.f32.mrb[0].mxu0
        %v910 = vadd.f32 %v742, %v909
        %v911 = vpop.f32.mrb[0].mxu0
        %912 = vmatprep.mubr.bf16.mxu0 0
        %913 = vmatmul.mubr.bf16.gmra.mrb[0].mxu0 %v842
        %v914 = vpop.f32.mrb[0].mxu0
        %v915 = vadd.f32 %v747, %v914
        %v916 = vpop.f32.mrb[0].mxu0
        %v917 = vpop.f32.mrb[0].mxu0
        %v918 = vadd.f32 %v750, %v917
        %v919 = vpop.f32.mrb[0].mxu0
        %920 = vmatprep.mubr.bf16.mxu0 0
        %921 = vmatmul.mubr.bf16.gmra.mrb[0].mxu0 %v845
        %v922 = vpop.f32.mrb[0].mxu0
        %v923 = vadd.f32 %v755, %v922
        %v924 = vpop.f32.mrb[0].mxu0
        %v925 = vpop.f32.mrb[0].mxu0
        %v926 = vadd.f32 %v758, %v925
        %v927 = vpop.f32.mrb[0].mxu0
        %928 = vmatprep.mubr.bf16.mxu0 0
        %929 = vmatmul.mubr.bf16.gmra.mrb[0].mxu0 %v848
        %v930 = vpop.f32.mrb[0].mxu0
        %v931 = vadd.f32 %v763, %v930
        %v932 = vpop.f32.mrb[0].mxu0
        %v933 = vpop.f32.mrb[0].mxu0
        %v934 = vadd.f32 %v766, %v933
        %v935 = vpop.f32.mrb[0].mxu0
        %936 = vmatprep.mubr.bf16.mxu0 0
        %937 = vmatmul.mubr.bf16.gmra.mrb[0].mxu0 %v851
        %v938 = vpop.f32.mrb[0].mxu0
        %v939 = vadd.f32 %v771, %v938
        %v940 = vpop.f32.mrb[0].mxu0
        %v941 = vpop.f32.mrb[0].mxu0
        %v942 = vadd.f32 %v774, %v941
        %v943 = vpop.f32.mrb[0].mxu0
        %944 = vmatprep.mubr.bf16.mxu0 0
        %945 = vmatmul.mubr.bf16.gmra.mrb[0].mxu0 %v854
        %v946 = vpop.f32.mrb[0].mxu0
        %v947 = vadd.f32 %v779, %v946
        %v948 = vpop.f32.mrb[0].mxu0
        %v949 = vpop.f32.mrb[0].mxu0
        %v950 = vadd.f32 %v782, %v949
        %v951 = vpop.f32.mrb[0].mxu0
        %952 = vdwg.mxu0
        %v953 = vld [vmem:[%s4] sm:$0x1]
        %v955 = vlaneseq
        %v956 = vshrl.u32 %v955, 7
        %v957 = vsub.s32 0, %v956
        %v958 = vrot.slane %v953, %v957
        %v960 = vadd.f32 %v891, %v958
        %v961 = vadd.f32 %v894, %v958
        %v962 = vadd.f32 %v899, %v958
        %v963 = vadd.f32 %v902, %v958
        %v964 = vadd.f32 %v907, %v958
        %v965 = vadd.f32 %v910, %v958
        %v966 = vadd.f32 %v915, %v958
        %v967 = vadd.f32 %v918, %v958
        %v968 = vadd.f32 %v923, %v958
        %v969 = vadd.f32 %v926, %v958
        %v970 = vadd.f32 %v931, %v958
        %v971 = vadd.f32 %v934, %v958
        %v972 = vadd.f32 %v939, %v958
        %v973 = vadd.f32 %v942, %v958
        %v974 = vadd.f32 %v947, %v958
        %v975 = vadd.f32 %v950, %v958
        %v976 = vmax.f32 %v960, 0.0
        %v977 = vmax.f32 %v961, 0.0
        %v978 = vmax.f32 %v962, 0.0
        %v979 = vmax.f32 %v963, 0.0
        %v980 = vmax.f32 %v964, 0.0
        %v981 = vmax.f32 %v965, 0.0
        %v982 = vmax.f32 %v966, 0.0
        %v983 = vmax.f32 %v967, 0.0
        %v984 = vmax.f32 %v968, 0.0
        %v985 = vmax.f32 %v969, 0.0
        %v986 = vmax.f32 %v970, 0.0
        %v987 = vmax.f32 %v971, 0.0
        %v988 = vmax.f32 %v972, 0.0
        %v989 = vmax.f32 %v973, 0.0
        %v990 = vmax.f32 %v974, 0.0
        %v991 = vmax.f32 %v975, 0.0
        %v992 = vpack.c.bf16 %v977, %v976
        %v993 = vpack.c.bf16 %v979, %v978
        %v994 = vpack.c.bf16 %v981, %v980
        %v995 = vpack.c.bf16 %v983, %v982
        %v996 = vpack.c.bf16 %v985, %v984
        %v997 = vpack.c.bf16 %v987, %v986
        %v998 = vpack.c.bf16 %v989, %v988
        %v999 = vpack.c.bf16 %v991, %v990
        %v1000 = vld [vmem:[%s5] sm:$0xf]
        %v1001 = vld [vmem:[%s5 + $0x4] sm:$0xf]
        %v1002 = vld [vmem:[%s5 + $0x8] sm:$0xf]
        %v1003 = vld [vmem:[%s5 + $0xc] sm:$0xf]
        %v1004 = vld [vmem:[%s5 + $0x10] sm:$0xf]
        %v1005 = vld [vmem:[%s5 + $0x14] sm:$0xf]
        %v1006 = vld [vmem:[%s5 + $0x18] sm:$0xf]
        %v1007 = vld [vmem:[%s5 + $0x1c] sm:$0xf]
        %v1008 = vld [vmem:[%s5 + $0x20] sm:$0xf]
        %v1009 = vld [vmem:[%s5 + $0x24] sm:$0xf]
        %v1010 = vld [vmem:[%s5 + $0x28] sm:$0xf]
        %v1011 = vld [vmem:[%s5 + $0x2c] sm:$0xf]
        %v1012 = vld [vmem:[%s5 + $0x30] sm:$0xf]
        %v1013 = vld [vmem:[%s5 + $0x34] sm:$0xf]
        %v1014 = vld [vmem:[%s5 + $0x38] sm:$0xf]
        %v1015 = vld [vmem:[%s5 + $0x3c] sm:$0xf]
        %v1016 = vld [vmem:[#allocation7] sm:$0x1]
        %v1018 = vlaneseq
        %v1019 = vshrl.u32 %v1018, 7
        %v1020 = vsub.s32 0, %v1019
        %v1021 = vrot.slane %v1016, %v1020
        %v1039 = vunpack.c.l.b16 %v1000
        %v1040 = vunpack.c.l.b16 %v1001
        %v1041 = vunpack.c.l.b16 %v1002
        %v1042 = vunpack.c.l.b16 %v1003
        %v1043 = vunpack.c.l.b16 %v1004
        %v1044 = vunpack.c.l.b16 %v1005
        %v1045 = vunpack.c.l.b16 %v1006
        %v1046 = vunpack.c.l.b16 %v1007
        %v1047 = vunpack.c.l.b16 %v1008
        %v1048 = vunpack.c.l.b16 %v1009
        %v1049 = vunpack.c.l.b16 %v1010
        %v1050 = vunpack.c.l.b16 %v1011
        %v1051 = vunpack.c.l.b16 %v1012
        %v1052 = vunpack.c.l.b16 %v1013
        %v1053 = vunpack.c.l.b16 %v1014
        %v1054 = vunpack.c.l.b16 %v1015
        %v1055 = vpack.c.b16 %v1040, %v1039
        %v1056 = vpack.c.b16 %v1042, %v1041
        %v1057 = vpack.c.b16 %v1044, %v1043
        %v1058 = vpack.c.b16 %v1046, %v1045
        %v1059 = vpack.c.b16 %v1048, %v1047
        %v1060 = vpack.c.b16 %v1050, %v1049
        %v1061 = vpack.c.b16 %v1052, %v1051
        %v1062 = vpack.c.b16 %v1054, %v1053
        %1071 = vmatprep.subr.bf16.mxu0 0
        %1072 = vmatpush1.bf16.msra.mxu0 %v1055
        %1073 = vmatprep.subr.bf16.mxu0 0
        %1074 = vmatpush1.bf16.msra.mxu0 %v1056
        %1075 = vmatprep.subr.bf16.mxu0 0
        %1076 = vmatpush1.bf16.msra.mxu0 %v1057
        %1077 = vmatprep.subr.bf16.mxu0 0
        %1078 = vmatpush1.bf16.msra.mxu0 %v1058
        %1079 = vmatprep.subr.bf16.mxu0 0
        %1080 = vmatpush1.bf16.msra.mxu0 %v1059
        %1081 = vmatprep.subr.bf16.mxu0 0
        %1082 = vmatpush1.bf16.msra.mxu0 %v1060
        %1083 = vmatprep.subr.bf16.mxu0 0
        %1084 = vmatpush1.bf16.msra.mxu0 %v1061
        %1085 = vmatprep.subr.bf16.mxu0 0
        %1086 = vmatpush1.bf16.msra.mxu0 %v1062
        %1087 = vmatprep.subr.bf16.mxu0 0
        %1088 = vmatpush1.bf16.msra.mxu0 0
        %1089 = vmatprep.subr.bf16.mxu0 0
        %1090 = vmatpush1.bf16.msra.mxu0 0
        %1091 = vmatprep.subr.bf16.mxu0 0
        %1092 = vmatpush1.bf16.msra.mxu0 0
        %1093 = vmatprep.subr.bf16.mxu0 0
        %1094 = vmatpush1.bf16.msra.mxu0 0
        %1095 = vmatprep.subr.bf16.mxu0 0
        %1096 = vmatpush1.bf16.msra.mxu0 0
        %1097 = vmatprep.subr.bf16.mxu0 0
        %1098 = vmatpush1.bf16.msra.mxu0 0
        %1099 = vmatprep.subr.bf16.mxu0 0
        %1100 = vmatpush1.bf16.msra.mxu0 0
        %1101 = vmatprep.subr.bf16.mxu0 0
        %1102 = vmatpush1.bf16.msra.mxu0 0
        %1103 = vmatprep.mubr.bf16.mxu0 0
        %1104 = vmatmul.mubr.bf16.gmra.mrb[0].mxu0 %v992
        %v1105 = vpop.f32.mrb[0].mxu0
        %v1106 = vadd.f32 %v1021, %v1105
        %v1107 = vpop.f32.mrb[0].mxu0
        %v1108 = vpop.f32.mrb[0].mxu0
        %v1109 = vadd.f32 %v1021, %v1108
        %v1110 = vpop.f32.mrb[0].mxu0
        %1111 = vmatprep.mubr.bf16.mxu0 0
        %1112 = vmatmul.mubr.bf16.gmra.mrb[0].mxu0 %v993
        %v1113 = vpop.f32.mrb[0].mxu0
        %v1114 = vadd.f32 %v1021, %v1113
        %v1115 = vpop.f32.mrb[0].mxu0
        %v1116 = vpop.f32.mrb[0].mxu0
        %v1117 = vadd.f32 %v1021, %v1116
        %v1118 = vpop.f32.mrb[0].mxu0
        %1119 = vmatprep.mubr.bf16.mxu0 0
        %1120 = vmatmul.mubr.bf16.gmra.mrb[0].mxu0 %v994
        %v1121 = vpop.f32.mrb[0].mxu0
        %v1122 = vadd.f32 %v1021, %v1121
        %v1123 = vpop.f32.mrb[0].mxu0
        %v1124 = vpop.f32.mrb[0].mxu0
        %v1125 = vadd.f32 %v1021, %v1124
        %v1126 = vpop.f32.mrb[0].mxu0
        %1127 = vmatprep.mubr.bf16.mxu0 0
        %1128 = vmatmul.mubr.bf16.gmra.mrb[0].mxu0 %v995
        %v1129 = vpop.f32.mrb[0].mxu0
        %v1130 = vadd.f32 %v1021, %v1129
        %v1131 = vpop.f32.mrb[0].mxu0
        %v1132 = vpop.f32.mrb[0].mxu0
        %v1133 = vadd.f32 %v1021, %v1132
        %v1134 = vpop.f32.mrb[0].mxu0
        %1135 = vmatprep.mubr.bf16.mxu0 0
        %1136 = vmatmul.mubr.bf16.gmra.mrb[0].mxu0 %v996
        %v1137 = vpop.f32.mrb[0].mxu0
        %v1138 = vadd.f32 %v1021, %v1137
        %v1139 = vpop.f32.mrb[0].mxu0
        %v1140 = vpop.f32.mrb[0].mxu0
        %v1141 = vadd.f32 %v1021, %v1140
        %v1142 = vpop.f32.mrb[0].mxu0
        %1143 = vmatprep.mubr.bf16.mxu0 0
        %1144 = vmatmul.mubr.bf16.gmra.mrb[0].mxu0 %v997
        %v1145 = vpop.f32.mrb[0].mxu0
        %v1146 = vadd.f32 %v1021, %v1145
        %v1147 = vpop.f32.mrb[0].mxu0
        %v1148 = vpop.f32.mrb[0].mxu0
        %v1149 = vadd.f32 %v1021, %v1148
        %v1150 = vpop.f32.mrb[0].mxu0
        %1151 = vmatprep.mubr.bf16.mxu0 0
        %1152 = vmatmul.mubr.bf16.gmra.mrb[0].mxu0 %v998
        %v1153 = vpop.f32.mrb[0].mxu0
        %v1154 = vadd.f32 %v1021, %v1153
        %v1155 = vpop.f32.mrb[0].mxu0
        %v1156 = vpop.f32.mrb[0].mxu0
        %v1157 = vadd.f32 %v1021, %v1156
        %v1158 = vpop.f32.mrb[0].mxu0
        %1159 = vmatprep.mubr.bf16.mxu0 0
        %1160 = vmatmul.mubr.bf16.gmra.mrb[0].mxu0 %v999
        %v1161 = vpop.f32.mrb[0].mxu0
        %v1162 = vadd.f32 %v1021, %v1161
        %v1163 = vpop.f32.mrb[0].mxu0
        %v1164 = vpop.f32.mrb[0].mxu0
        %v1165 = vadd.f32 %v1021, %v1164
        %v1166 = vpop.f32.mrb[0].mxu0
        %1167 = vdwg.mxu0
        %v1168 = vmax.f32 %v1106, 0.0
        %v1169 = vmax.f32 %v1109, 0.0
        %v1170 = vmax.f32 %v1114, 0.0
        %v1171 = vmax.f32 %v1117, 0.0
        %v1172 = vmax.f32 %v1122, 0.0
        %v1173 = vmax.f32 %v1125, 0.0
        %v1174 = vmax.f32 %v1130, 0.0
        %v1175 = vmax.f32 %v1133, 0.0
        %v1176 = vmax.f32 %v1138, 0.0
        %v1177 = vmax.f32 %v1141, 0.0
        %v1178 = vmax.f32 %v1146, 0.0
        %v1179 = vmax.f32 %v1149, 0.0
        %v1180 = vmax.f32 %v1154, 0.0
        %v1181 = vmax.f32 %v1157, 0.0
        %v1182 = vmax.f32 %v1162, 0.0
        %v1183 = vmax.f32 %v1165, 0.0
        %v1184 = vpack.c.bf16 %v1169, %v1168
        %v1185 = vpack.c.bf16 %v1171, %v1170
        %v1186 = vpack.c.bf16 %v1173, %v1172
        %v1187 = vpack.c.bf16 %v1175, %v1174
        %v1188 = vpack.c.bf16 %v1177, %v1176
        %v1189 = vpack.c.bf16 %v1179, %v1178
        %v1190 = vpack.c.bf16 %v1181, %v1180
        %v1191 = vpack.c.bf16 %v1183, %v1182
        %v1192 = vld [vmem:[%s7] sm:$0xf]
        %v1193 = vld [vmem:[%s7 + $0x4] sm:$0xf]
        %v1194 = vld [vmem:[%s7 + $0x8] sm:$0xf]
        %v1195 = vld [vmem:[%s7 + $0xc] sm:$0xf]
        %v1196 = vld [vmem:[%s7 + $0x10] sm:$0xf]
        %v1197 = vld [vmem:[%s7 + $0x14] sm:$0xf]
        %v1198 = vld [vmem:[%s7 + $0x18] sm:$0xf]
        %v1199 = vld [vmem:[%s7 + $0x1c] sm:$0xf]
        %v1200 = vld [vmem:[%s7 + $0x20] sm:$0xf]
        %v1201 = vld [vmem:[%s7 + $0x24] sm:$0xf]
        %v1202 = vld [vmem:[%s7 + $0x28] sm:$0xf]
        %v1203 = vld [vmem:[%s7 + $0x2c] sm:$0xf]
        %v1204 = vld [vmem:[%s7 + $0x30] sm:$0xf]
        %v1205 = vld [vmem:[%s7 + $0x34] sm:$0xf]
        %v1206 = vld [vmem:[%s7 + $0x38] sm:$0xf]
        %v1207 = vld [vmem:[%s7 + $0x3c] sm:$0xf]
        %v1208 = vld [vmem:[#allocation8] sm:$0x1]
        %v1210 = vlaneseq
        %v1211 = vshrl.u32 %v1210, 7
        %v1212 = vsub.s32 0, %v1211
        %v1213 = vrot.slane %v1208, %v1212
        %v1231 = vunpack.c.l.b16 %v1192
        %v1232 = vunpack.c.l.b16 %v1193
        %v1233 = vunpack.c.l.b16 %v1194
        %v1234 = vunpack.c.l.b16 %v1195
        %v1235 = vunpack.c.l.b16 %v1196
        %v1236 = vunpack.c.l.b16 %v1197
        %v1237 = vunpack.c.l.b16 %v1198
        %v1238 = vunpack.c.l.b16 %v1199
        %v1239 = vunpack.c.l.b16 %v1200
        %v1240 = vunpack.c.l.b16 %v1201
        %v1241 = vunpack.c.l.b16 %v1202
        %v1242 = vunpack.c.l.b16 %v1203
        %v1243 = vunpack.c.l.b16 %v1204
        %v1244 = vunpack.c.l.b16 %v1205
        %v1245 = vunpack.c.l.b16 %v1206
        %v1246 = vunpack.c.l.b16 %v1207
        %v1247 = vpack.c.b16 %v1232, %v1231
        %v1248 = vpack.c.b16 %v1234, %v1233
        %v1249 = vpack.c.b16 %v1236, %v1235
        %v1250 = vpack.c.b16 %v1238, %v1237
        %v1251 = vpack.c.b16 %v1240, %v1239
        %v1252 = vpack.c.b16 %v1242, %v1241
        %v1253 = vpack.c.b16 %v1244, %v1243
        %v1254 = vpack.c.b16 %v1246, %v1245
        %1263 = vmatprep.subr.bf16.mxu0 0
        %1264 = vmatpush1.bf16.msra.mxu0 %v1247
        %1265 = vmatprep.subr.bf16.mxu0 0
        %1266 = vmatpush1.bf16.msra.mxu0 %v1248
        %1267 = vmatprep.subr.bf16.mxu0 0
        %1268 = vmatpush1.bf16.msra.mxu0 %v1249
        %1269 = vmatprep.subr.bf16.mxu0 0
        %1270 = vmatpush1.bf16.msra.mxu0 %v1250
        %1271 = vmatprep.subr.bf16.mxu0 0
        %1272 = vmatpush1.bf16.msra.mxu0 %v1251
        %1273 = vmatprep.subr.bf16.mxu0 0
        %1274 = vmatpush1.bf16.msra.mxu0 %v1252
        %1275 = vmatprep.subr.bf16.mxu0 0
        %1276 = vmatpush1.bf16.msra.mxu0 %v1253
        %1277 = vmatprep.subr.bf16.mxu0 0
        %1278 = vmatpush1.bf16.msra.mxu0 %v1254
        %1279 = vmatprep.subr.bf16.mxu0 0
        %1280 = vmatpush1.bf16.msra.mxu0 0
        %1281 = vmatprep.subr.bf16.mxu0 0
        %1282 = vmatpush1.bf16.msra.mxu0 0
        %1283 = vmatprep.subr.bf16.mxu0 0
        %1284 = vmatpush1.bf16.msra.mxu0 0
        %1285 = vmatprep.subr.bf16.mxu0 0
        %1286 = vmatpush1.bf16.msra.mxu0 0
        %1287 = vmatprep.subr.bf16.mxu0 0
        %1288 = vmatpush1.bf16.msra.mxu0 0
        %1289 = vmatprep.subr.bf16.mxu0 0
        %1290 = vmatpush1.bf16.msra.mxu0 0
        %1291 = vmatprep.subr.bf16.mxu0 0
        %1292 = vmatpush1.bf16.msra.mxu0 0
        %1293 = vmatprep.subr.bf16.mxu0 0
        %1294 = vmatpush1.bf16.msra.mxu0 0
        %1295 = vmatprep.mubr.bf16.mxu0 0
        %1296 = vmatmul.mubr.bf16.gmra.mrb[0].mxu0 %v1184
        %v1297 = vpop.f32.mrb[0].mxu0
        %v1298 = vadd.f32 %v1213, %v1297
        %v1299 = vpop.f32.mrb[0].mxu0
        %v1300 = vpop.f32.mrb[0].mxu0
        %v1301 = vadd.f32 %v1213, %v1300
        %v1302 = vpop.f32.mrb[0].mxu0
        %1303 = vmatprep.mubr.bf16.mxu0 0
        %1304 = vmatmul.mubr.bf16.gmra.mrb[0].mxu0 %v1185
        %v1305 = vpop.f32.mrb[0].mxu0
        %v1306 = vadd.f32 %v1213, %v1305
        %v1307 = vpop.f32.mrb[0].mxu0
        %v1308 = vpop.f32.mrb[0].mxu0
        %v1309 = vadd.f32 %v1213, %v1308
        %v1310 = vpop.f32.mrb[0].mxu0
        %1311 = vmatprep.mubr.bf16.mxu0 0
        %1312 = vmatmul.mubr.bf16.gmra.mrb[0].mxu0 %v1186
        %v1313 = vpop.f32.mrb[0].mxu0
        %v1314 = vadd.f32 %v1213, %v1313
        %v1315 = vpop.f32.mrb[0].mxu0
        %v1316 = vpop.f32.mrb[0].mxu0
        %v1317 = vadd.f32 %v1213, %v1316
        %v1318 = vpop.f32.mrb[0].mxu0
        %1319 = vmatprep.mubr.bf16.mxu0 0
        %1320 = vmatmul.mubr.bf16.gmra.mrb[0].mxu0 %v1187
        %v1321 = vpop.f32.mrb[0].mxu0
        %v1322 = vadd.f32 %v1213, %v1321
        %v1323 = vpop.f32.mrb[0].mxu0
        %v1324 = vpop.f32.mrb[0].mxu0
        %v1325 = vadd.f32 %v1213, %v1324
        %v1326 = vpop.f32.mrb[0].mxu0
        %1327 = vmatprep.mubr.bf16.mxu0 0
        %1328 = vmatmul.mubr.bf16.gmra.mrb[0].mxu0 %v1188
        %v1329 = vpop.f32.mrb[0].mxu0
        %v1330 = vadd.f32 %v1213, %v1329
        %v1331 = vpop.f32.mrb[0].mxu0
        %v1332 = vpop.f32.mrb[0].mxu0
        %v1333 = vadd.f32 %v1213, %v1332
        %v1334 = vpop.f32.mrb[0].mxu0
        %1335 = vmatprep.mubr.bf16.mxu0 0
        %1336 = vmatmul.mubr.bf16.gmra.mrb[0].mxu0 %v1189
        %v1337 = vpop.f32.mrb[0].mxu0
        %v1338 = vadd.f32 %v1213, %v1337
        %v1339 = vpop.f32.mrb[0].mxu0
        %v1340 = vpop.f32.mrb[0].mxu0
        %v1341 = vadd.f32 %v1213, %v1340
        %v1342 = vpop.f32.mrb[0].mxu0
        %1343 = vmatprep.mubr.bf16.mxu0 0
        %1344 = vmatmul.mubr.bf16.gmra.mrb[0].mxu0 %v1190
        %v1345 = vpop.f32.mrb[0].mxu0
        %v1346 = vadd.f32 %v1213, %v1345
        %v1347 = vpop.f32.mrb[0].mxu0
        %v1348 = vpop.f32.mrb[0].mxu0
        %v1349 = vadd.f32 %v1213, %v1348
        %v1350 = vpop.f32.mrb[0].mxu0
        %1351 = vmatprep.mubr.bf16.mxu0 0
        %1352 = vmatmul.mubr.bf16.gmra.mrb[0].mxu0 %v1191
        %v1353 = vpop.f32.mrb[0].mxu0
        %v1354 = vadd.f32 %v1213, %v1353
        %v1355 = vpop.f32.mrb[0].mxu0
        %v1356 = vpop.f32.mrb[0].mxu0
        %v1357 = vadd.f32 %v1213, %v1356
        %v1358 = vpop.f32.mrb[0].mxu0
        %1359 = vdwg.mxu0
        %v1360 = vpack.c.bf16 %v1301, %v1298
        %v1361 = vpack.c.bf16 %v1309, %v1306
        %v1362 = vpack.c.bf16 %v1317, %v1314
        %v1363 = vpack.c.bf16 %v1325, %v1322
        %v1364 = vpack.c.bf16 %v1333, %v1330
        %v1365 = vpack.c.bf16 %v1341, %v1338
        %v1366 = vpack.c.bf16 %v1349, %v1346
        %v1367 = vpack.c.bf16 %v1357, %v1354
        %v1368 = vld [vmem:[%s9] sm:$0xf]
        %v1369 = vld [vmem:[%s9 + $0x4] sm:$0xf]
        %v1370 = vld [vmem:[%s9 + $0x8] sm:$0xf]
        %v1371 = vld [vmem:[%s9 + $0xc] sm:$0xf]
        %v1372 = vld [vmem:[%s9 + $0x10] sm:$0xf]
        %v1373 = vld [vmem:[%s9 + $0x14] sm:$0xf]
        %v1374 = vld [vmem:[%s9 + $0x18] sm:$0xf]
        %v1375 = vld [vmem:[%s9 + $0x1c] sm:$0xf]
        %v1376 = vld [vmem:[%s9 + $0x20] sm:$0xf]
        %v1377 = vld [vmem:[%s9 + $0x24] sm:$0xf]
        %v1378 = vld [vmem:[%s9 + $0x28] sm:$0xf]
        %v1379 = vld [vmem:[%s9 + $0x2c] sm:$0xf]
        %v1380 = vld [vmem:[%s9 + $0x30] sm:$0xf]
        %v1381 = vld [vmem:[%s9 + $0x34] sm:$0xf]
        %v1382 = vld [vmem:[%s9 + $0x38] sm:$0xf]
        %v1383 = vld [vmem:[%s9 + $0x3c] sm:$0xf]
        %v1384 = vld [vmem:[#allocation10] sm:$0x1]
        %v1386 = vlaneseq
        %v1387 = vshrl.u32 %v1386, 7
        %v1388 = vsub.s32 0, %v1387
        %v1389 = vrot.slane %v1384, %v1388
        %v1407 = vunpack.c.l.b16 %v1368
        %v1408 = vunpack.c.l.b16 %v1369
        %v1409 = vunpack.c.l.b16 %v1370
        %v1410 = vunpack.c.l.b16 %v1371
        %v1411 = vunpack.c.l.b16 %v1372
        %v1412 = vunpack.c.l.b16 %v1373
        %v1413 = vunpack.c.l.b16 %v1374
        %v1414 = vunpack.c.l.b16 %v1375
        %v1415 = vunpack.c.l.b16 %v1376
        %v1416 = vunpack.c.l.b16 %v1377
        %v1417 = vunpack.c.l.b16 %v1378
        %v1418 = vunpack.c.l.b16 %v1379
        %v1419 = vunpack.c.l.b16 %v1380
        %v1420 = vunpack.c.l.b16 %v1381
        %v1421 = vunpack.c.l.b16 %v1382
        %v1422 = vunpack.c.l.b16 %v1383
        %v1423 = vpack.c.b16 %v1408, %v1407
        %v1424 = vpack.c.b16 %v1410, %v1409
        %v1425 = vpack.c.b16 %v1412, %v1411
        %v1426 = vpack.c.b16 %v1414, %v1413
        %v1427 = vpack.c.b16 %v1416, %v1415
        %v1428 = vpack.c.b16 %v1418, %v1417
        %v1429 = vpack.c.b16 %v1420, %v1419
        %v1430 = vpack.c.b16 %v1422, %v1421
        %1439 = vmatprep.subr.bf16.mxu0 0
        %1440 = vmatpush1.bf16.msra.mxu0 %v1423
        %1441 = vmatprep.subr.bf16.mxu0 0
        %1442 = vmatpush1.bf16.msra.mxu0 %v1424
        %1443 = vmatprep.subr.bf16.mxu0 0
        %1444 = vmatpush1.bf16.msra.mxu0 %v1425
        %1445 = vmatprep.subr.bf16.mxu0 0
        %1446 = vmatpush1.bf16.msra.mxu0 %v1426
        %1447 = vmatprep.subr.bf16.mxu0 0
        %1448 = vmatpush1.bf16.msra.mxu0 %v1427
        %1449 = vmatprep.subr.bf16.mxu0 0
        %1450 = vmatpush1.bf16.msra.mxu0 %v1428
        %1451 = vmatprep.subr.bf16.mxu0 0
        %1452 = vmatpush1.bf16.msra.mxu0 %v1429
        %1453 = vmatprep.subr.bf16.mxu0 0
        %1454 = vmatpush1.bf16.msra.mxu0 %v1430
        %1455 = vmatprep.subr.bf16.mxu0 0
        %1456 = vmatpush1.bf16.msra.mxu0 0
        %1457 = vmatprep.subr.bf16.mxu0 0
        %1458 = vmatpush1.bf16.msra.mxu0 0
        %1459 = vmatprep.subr.bf16.mxu0 0
        %1460 = vmatpush1.bf16.msra.mxu0 0
        %1461 = vmatprep.subr.bf16.mxu0 0
        %1462 = vmatpush1.bf16.msra.mxu0 0
        %1463 = vmatprep.subr.bf16.mxu0 0
        %1464 = vmatpush1.bf16.msra.mxu0 0
        %1465 = vmatprep.subr.bf16.mxu0 0
        %1466 = vmatpush1.bf16.msra.mxu0 0
        %1467 = vmatprep.subr.bf16.mxu0 0
        %1468 = vmatpush1.bf16.msra.mxu0 0
        %1469 = vmatprep.subr.bf16.mxu0 0
        %1470 = vmatpush1.bf16.msra.mxu0 0
        %1471 = vmatprep.mubr.bf16.mxu0 0
        %1472 = vmatmul.mubr.bf16.gmra.mrb[0].mxu0 %v1360
        %v1473 = vpop.f32.mrb[0].mxu0
        %v1474 = vadd.f32 %v1389, %v1473
        %v1475 = vpop.f32.mrb[0].mxu0
        %v1476 = vpop.f32.mrb[0].mxu0
        %v1477 = vadd.f32 %v1389, %v1476
        %v1478 = vpop.f32.mrb[0].mxu0
        %1479 = vmatprep.mubr.bf16.mxu0 0
        %1480 = vmatmul.mubr.bf16.gmra.mrb[0].mxu0 %v1361
        %v1481 = vpop.f32.mrb[0].mxu0
        %v1482 = vadd.f32 %v1389, %v1481
        %v1483 = vpop.f32.mrb[0].mxu0
        %v1484 = vpop.f32.mrb[0].mxu0
        %v1485 = vadd.f32 %v1389, %v1484
        %v1486 = vpop.f32.mrb[0].mxu0
        %1487 = vmatprep.mubr.bf16.mxu0 0
        %1488 = vmatmul.mubr.bf16.gmra.mrb[0].mxu0 %v1362
        %v1489 = vpop.f32.mrb[0].mxu0
        %v1490 = vadd.f32 %v1389, %v1489
        %v1491 = vpop.f32.mrb[0].mxu0
        %v1492 = vpop.f32.mrb[0].mxu0
        %v1493 = vadd.f32 %v1389, %v1492
        %v1494 = vpop.f32.mrb[0].mxu0
        %1495 = vmatprep.mubr.bf16.mxu0 0
        %1496 = vmatmul.mubr.bf16.gmra.mrb[0].mxu0 %v1363
        %v1497 = vpop.f32.mrb[0].mxu0
        %v1498 = vadd.f32 %v1389, %v1497
        %v1499 = vpop.f32.mrb[0].mxu0
        %v1500 = vpop.f32.mrb[0].mxu0
        %v1501 = vadd.f32 %v1389, %v1500
        %v1502 = vpop.f32.mrb[0].mxu0
        %1503 = vmatprep.mubr.bf16.mxu0 0
        %1504 = vmatmul.mubr.bf16.gmra.mrb[0].mxu0 %v1364
        %v1505 = vpop.f32.mrb[0].mxu0
        %v1506 = vadd.f32 %v1389, %v1505
        %v1507 = vpop.f32.mrb[0].mxu0
        %v1508 = vpop.f32.mrb[0].mxu0
        %v1509 = vadd.f32 %v1389, %v1508
        %v1510 = vpop.f32.mrb[0].mxu0
        %1511 = vmatprep.mubr.bf16.mxu0 0
        %1512 = vmatmul.mubr.bf16.gmra.mrb[0].mxu0 %v1365
        %v1513 = vpop.f32.mrb[0].mxu0
        %v1514 = vadd.f32 %v1389, %v1513
        %v1515 = vpop.f32.mrb[0].mxu0
        %v1516 = vpop.f32.mrb[0].mxu0
        %v1517 = vadd.f32 %v1389, %v1516
        %v1518 = vpop.f32.mrb[0].mxu0
        %1519 = vmatprep.mubr.bf16.mxu0 0
        %1520 = vmatmul.mubr.bf16.gmra.mrb[0].mxu0 %v1366
        %v1521 = vpop.f32.mrb[0].mxu0
        %v1522 = vadd.f32 %v1389, %v1521
        %v1523 = vpop.f32.mrb[0].mxu0
        %v1524 = vpop.f32.mrb[0].mxu0
        %v1525 = vadd.f32 %v1389, %v1524
        %v1526 = vpop.f32.mrb[0].mxu0
        %1527 = vmatprep.mubr.bf16.mxu0 0
        %1528 = vmatmul.mubr.bf16.gmra.mrb[0].mxu0 %v1367
        %v1529 = vpop.f32.mrb[0].mxu0
        %v1530 = vadd.f32 %v1389, %v1529
        %v1531 = vpop.f32.mrb[0].mxu0
        %v1532 = vpop.f32.mrb[0].mxu0
        %v1533 = vadd.f32 %v1389, %v1532
        %v1534 = vpop.f32.mrb[0].mxu0
        %1535 = vdwg.mxu0
        %v1536 = vmax.f32 %v1474, 0.0
        %v1537 = vmax.f32 %v1477, 0.0
        %v1538 = vmax.f32 %v1482, 0.0
        %v1539 = vmax.f32 %v1485, 0.0
        %v1540 = vmax.f32 %v1490, 0.0
        %v1541 = vmax.f32 %v1493, 0.0
        %v1542 = vmax.f32 %v1498, 0.0
        %v1543 = vmax.f32 %v1501, 0.0
        %v1544 = vmax.f32 %v1506, 0.0
        %v1545 = vmax.f32 %v1509, 0.0
        %v1546 = vmax.f32 %v1514, 0.0
        %v1547 = vmax.f32 %v1517, 0.0
        %v1548 = vmax.f32 %v1522, 0.0
        %v1549 = vmax.f32 %v1525, 0.0
        %v1550 = vmax.f32 %v1530, 0.0
        %v1551 = vmax.f32 %v1533, 0.0
        %v1552 = vpack.c.bf16 %v1537, %v1536
        %v1553 = vpack.c.bf16 %v1539, %v1538
        %v1554 = vpack.c.bf16 %v1541, %v1540
        %v1555 = vpack.c.bf16 %v1543, %v1542
        %v1556 = vpack.c.bf16 %v1545, %v1544
        %v1557 = vpack.c.bf16 %v1547, %v1546
        %v1558 = vpack.c.bf16 %v1549, %v1548
        %v1559 = vpack.c.bf16 %v1551, %v1550
        %v1560 = vld [vmem:[%s11] sm:$0xf]
        %v1561 = vld [vmem:[%s11 + $0x4] sm:$0xf]
        %v1562 = vld [vmem:[%s11 + $0x8] sm:$0xf]
        %v1563 = vld [vmem:[%s11 + $0xc] sm:$0xf]
        %v1564 = vld [vmem:[%s11 + $0x10] sm:$0xf]
        %v1565 = vld [vmem:[%s11 + $0x14] sm:$0xf]
        %v1566 = vld [vmem:[%s11 + $0x18] sm:$0xf]
        %v1567 = vld [vmem:[%s11 + $0x1c] sm:$0xf]
        %v1568 = vld [vmem:[%s11 + $0x20] sm:$0xf]
        %v1569 = vld [vmem:[%s11 + $0x24] sm:$0xf]
        %v1570 = vld [vmem:[%s11 + $0x28] sm:$0xf]
        %v1571 = vld [vmem:[%s11 + $0x2c] sm:$0xf]
        %v1572 = vld [vmem:[%s11 + $0x30] sm:$0xf]
        %v1573 = vld [vmem:[%s11 + $0x34] sm:$0xf]
        %v1574 = vld [vmem:[%s11 + $0x38] sm:$0xf]
        %v1575 = vld [vmem:[%s11 + $0x3c] sm:$0xf]
        %v1576 = vld [vmem:[%s12] sm:$0x1]
        %v1578 = vlaneseq
        %v1579 = vshrl.u32 %v1578, 7
        %v1580 = vsub.s32 0, %v1579
        %v1581 = vrot.slane %v1576, %v1580
        %v1599 = vunpack.c.l.b16 %v1560
        %v1600 = vunpack.c.l.b16 %v1561
        %v1601 = vunpack.c.l.b16 %v1562
        %v1602 = vunpack.c.l.b16 %v1563
        %v1603 = vunpack.c.l.b16 %v1564
        %v1604 = vunpack.c.l.b16 %v1565
        %v1605 = vunpack.c.l.b16 %v1566
        %v1606 = vunpack.c.l.b16 %v1567
        %v1607 = vunpack.c.l.b16 %v1568
        %v1608 = vunpack.c.l.b16 %v1569
        %v1609 = vunpack.c.l.b16 %v1570
        %v1610 = vunpack.c.l.b16 %v1571
        %v1611 = vunpack.c.l.b16 %v1572
        %v1612 = vunpack.c.l.b16 %v1573
        %v1613 = vunpack.c.l.b16 %v1574
        %v1614 = vunpack.c.l.b16 %v1575
        %v1615 = vpack.c.b16 %v1600, %v1599
        %v1616 = vpack.c.b16 %v1602, %v1601
        %v1617 = vpack.c.b16 %v1604, %v1603
        %v1618 = vpack.c.b16 %v1606, %v1605
        %v1619 = vpack.c.b16 %v1608, %v1607
        %v1620 = vpack.c.b16 %v1610, %v1609
        %v1621 = vpack.c.b16 %v1612, %v1611
        %v1622 = vpack.c.b16 %v1614, %v1613
        %1631 = vmatprep.subr.bf16.mxu0 0
        %1632 = vmatpush1.bf16.msra.mxu0 %v1615
        %1633 = vmatprep.subr.bf16.mxu0 0
        %1634 = vmatpush1.bf16.msra.mxu0 %v1616
        %1635 = vmatprep.subr.bf16.mxu0 0
        %1636 = vmatpush1.bf16.msra.mxu0 %v1617
        %1637 = vmatprep.subr.bf16.mxu0 0
        %1638 = vmatpush1.bf16.msra.mxu0 %v1618
        %1639 = vmatprep.subr.bf16.mxu0 0
        %1640 = vmatpush1.bf16.msra.mxu0 %v1619
        %1641 = vmatprep.subr.bf16.mxu0 0
        %1642 = vmatpush1.bf16.msra.mxu0 %v1620
        %1643 = vmatprep.subr.bf16.mxu0 0
        %1644 = vmatpush1.bf16.msra.mxu0 %v1621
        %1645 = vmatprep.subr.bf16.mxu0 0
        %1646 = vmatpush1.bf16.msra.mxu0 %v1622
        %1647 = vmatprep.subr.bf16.mxu0 0
        %1648 = vmatpush1.bf16.msra.mxu0 0
        %1649 = vmatprep.subr.bf16.mxu0 0
        %1650 = vmatpush1.bf16.msra.mxu0 0
        %1651 = vmatprep.subr.bf16.mxu0 0
        %1652 = vmatpush1.bf16.msra.mxu0 0
        %1653 = vmatprep.subr.bf16.mxu0 0
        %1654 = vmatpush1.bf16.msra.mxu0 0
        %1655 = vmatprep.subr.bf16.mxu0 0
        %1656 = vmatpush1.bf16.msra.mxu0 0
        %1657 = vmatprep.subr.bf16.mxu0 0
        %1658 = vmatpush1.bf16.msra.mxu0 0
        %1659 = vmatprep.subr.bf16.mxu0 0
        %1660 = vmatpush1.bf16.msra.mxu0 0
        %1661 = vmatprep.subr.bf16.mxu0 0
        %1662 = vmatpush1.bf16.msra.mxu0 0
        %1663 = vmatprep.mubr.bf16.mxu0 0
        %1664 = vmatmul.mubr.bf16.gmra.mrb[0].mxu0 %v1552
        %v1665 = vpop.f32.mrb[0].mxu0
        %v1666 = vadd.f32 %v1581, %v1665
        %v1667 = vpop.f32.mrb[0].mxu0
        %v1668 = vpop.f32.mrb[0].mxu0
        %v1669 = vadd.f32 %v1581, %v1668
        %v1670 = vpop.f32.mrb[0].mxu0
        %1671 = vmatprep.mubr.bf16.mxu0 0
        %1672 = vmatmul.mubr.bf16.gmra.mrb[0].mxu0 %v1553
        %v1673 = vpop.f32.mrb[0].mxu0
        %v1674 = vadd.f32 %v1581, %v1673
        %v1675 = vpop.f32.mrb[0].mxu0
        %v1676 = vpop.f32.mrb[0].mxu0
        %v1677 = vadd.f32 %v1581, %v1676
        %v1678 = vpop.f32.mrb[0].mxu0
        %1679 = vmatprep.mubr.bf16.mxu0 0
        %1680 = vmatmul.mubr.bf16.gmra.mrb[0].mxu0 %v1554
        %v1681 = vpop.f32.mrb[0].mxu0
        %v1682 = vadd.f32 %v1581, %v1681
        %v1683 = vpop.f32.mrb[0].mxu0
        %v1684 = vpop.f32.mrb[0].mxu0
        %v1685 = vadd.f32 %v1581, %v1684
        %v1686 = vpop.f32.mrb[0].mxu0
        %1687 = vmatprep.mubr.bf16.mxu0 0
        %1688 = vmatmul.mubr.bf16.gmra.mrb[0].mxu0 %v1555
        %v1689 = vpop.f32.mrb[0].mxu0
        %v1690 = vadd.f32 %v1581, %v1689
        %v1691 = vpop.f32.mrb[0].mxu0
        %v1692 = vpop.f32.mrb[0].mxu0
        %v1693 = vadd.f32 %v1581, %v1692
        %v1694 = vpop.f32.mrb[0].mxu0
        %1695 = vmatprep.mubr.bf16.mxu0 0
        %1696 = vmatmul.mubr.bf16.gmra.mrb[0].mxu0 %v1556
        %v1697 = vpop.f32.mrb[0].mxu0
        %v1698 = vadd.f32 %v1581, %v1697
        %v1699 = vpop.f32.mrb[0].mxu0
        %v1700 = vpop.f32.mrb[0].mxu0
        %v1701 = vadd.f32 %v1581, %v1700
        %v1702 = vpop.f32.mrb[0].mxu0
        %1703 = vmatprep.mubr.bf16.mxu0 0
        %1704 = vmatmul.mubr.bf16.gmra.mrb[0].mxu0 %v1557
        %v1705 = vpop.f32.mrb[0].mxu0
        %v1706 = vadd.f32 %v1581, %v1705
        %v1707 = vpop.f32.mrb[0].mxu0
        %v1708 = vpop.f32.mrb[0].mxu0
        %v1709 = vadd.f32 %v1581, %v1708
        %v1710 = vpop.f32.mrb[0].mxu0
        %1711 = vmatprep.mubr.bf16.mxu0 0
        %1712 = vmatmul.mubr.bf16.gmra.mrb[0].mxu0 %v1558
        %v1713 = vpop.f32.mrb[0].mxu0
        %v1714 = vadd.f32 %v1581, %v1713
        %v1715 = vpop.f32.mrb[0].mxu0
        %v1716 = vpop.f32.mrb[0].mxu0
        %v1717 = vadd.f32 %v1581, %v1716
        %v1718 = vpop.f32.mrb[0].mxu0
        %1719 = vmatprep.mubr.bf16.mxu0 0
        %1720 = vmatmul.mubr.bf16.gmra.mrb[0].mxu0 %v1559
        %v1721 = vpop.f32.mrb[0].mxu0
        %v1722 = vadd.f32 %v1581, %v1721
        %v1723 = vpop.f32.mrb[0].mxu0
        %v1724 = vpop.f32.mrb[0].mxu0
        %v1725 = vadd.f32 %v1581, %v1724
        %v1726 = vpop.f32.mrb[0].mxu0
        %1727 = vdwg.mxu0
        %v1728 = vmax.f32 %v1666, 0.0
        %v1729 = vmax.f32 %v1669, 0.0
        %v1730 = vmax.f32 %v1674, 0.0
        %v1731 = vmax.f32 %v1677, 0.0
        %v1732 = vmax.f32 %v1682, 0.0
        %v1733 = vmax.f32 %v1685, 0.0
        %v1734 = vmax.f32 %v1690, 0.0
        %v1735 = vmax.f32 %v1693, 0.0
        %v1736 = vmax.f32 %v1698, 0.0
        %v1737 = vmax.f32 %v1701, 0.0
        %v1738 = vmax.f32 %v1706, 0.0
        %v1739 = vmax.f32 %v1709, 0.0
        %v1740 = vmax.f32 %v1714, 0.0
        %v1741 = vmax.f32 %v1717, 0.0
        %v1742 = vmax.f32 %v1722, 0.0
        %v1743 = vmax.f32 %v1725, 0.0
        %v1744 = vpack.c.bf16 %v1729, %v1728
        %v1745 = vpack.c.bf16 %v1731, %v1730
        %v1746 = vpack.c.bf16 %v1733, %v1732
        %v1747 = vpack.c.bf16 %v1735, %v1734
        %v1748 = vpack.c.bf16 %v1737, %v1736
        %v1749 = vpack.c.bf16 %v1739, %v1738
        %v1750 = vpack.c.bf16 %v1741, %v1740
        %v1751 = vpack.c.bf16 %v1743, %v1742
        %v1752 = vld [vmem:[%s13] sm:$0xf]
        %v1753 = vld [vmem:[%s13 + $0x4] sm:$0xf]
        %v1754 = vld [vmem:[%s13 + $0x8] sm:$0xf]
        %v1755 = vld [vmem:[%s13 + $0xc] sm:$0xf]
        %v1756 = vld [vmem:[%s13 + $0x10] sm:$0xf]
        %v1757 = vld [vmem:[%s13 + $0x14] sm:$0xf]
        %v1758 = vld [vmem:[%s13 + $0x18] sm:$0xf]
        %v1759 = vld [vmem:[%s13 + $0x1c] sm:$0xf]
        %v1760 = vld [vmem:[%s13 + $0x20] sm:$0xf]
        %v1761 = vld [vmem:[%s13 + $0x24] sm:$0xf]
        %v1762 = vld [vmem:[%s13 + $0x28] sm:$0xf]
        %v1763 = vld [vmem:[%s13 + $0x2c] sm:$0xf]
        %v1764 = vld [vmem:[%s13 + $0x30] sm:$0xf]
        %v1765 = vld [vmem:[%s13 + $0x34] sm:$0xf]
        %v1766 = vld [vmem:[%s13 + $0x38] sm:$0xf]
        %v1767 = vld [vmem:[%s13 + $0x3c] sm:$0xf]
        %v1768 = vld [vmem:[%s14] sm:$0x1]
        %v1770 = vlaneseq
        %v1771 = vshrl.u32 %v1770, 7
        %v1772 = vsub.s32 0, %v1771
        %v1773 = vrot.slane %v1768, %v1772
        %v1791 = vunpack.c.l.b16 %v1752
        %v1792 = vunpack.c.l.b16 %v1753
        %v1793 = vunpack.c.l.b16 %v1754
        %v1794 = vunpack.c.l.b16 %v1755
        %v1795 = vunpack.c.l.b16 %v1756
        %v1796 = vunpack.c.l.b16 %v1757
        %v1797 = vunpack.c.l.b16 %v1758
        %v1798 = vunpack.c.l.b16 %v1759
        %v1799 = vunpack.c.l.b16 %v1760
        %v1800 = vunpack.c.l.b16 %v1761
        %v1801 = vunpack.c.l.b16 %v1762
        %v1802 = vunpack.c.l.b16 %v1763
        %v1803 = vunpack.c.l.b16 %v1764
        %v1804 = vunpack.c.l.b16 %v1765
        %v1805 = vunpack.c.l.b16 %v1766
        %v1806 = vunpack.c.l.b16 %v1767
        %v1807 = vpack.c.b16 %v1792, %v1791
        %v1808 = vpack.c.b16 %v1794, %v1793
        %v1809 = vpack.c.b16 %v1796, %v1795
        %v1810 = vpack.c.b16 %v1798, %v1797
        %v1811 = vpack.c.b16 %v1800, %v1799
        %v1812 = vpack.c.b16 %v1802, %v1801
        %v1813 = vpack.c.b16 %v1804, %v1803
        %v1814 = vpack.c.b16 %v1806, %v1805
        %1823 = vmatprep.subr.bf16.mxu0 0
        %1824 = vmatpush1.bf16.msra.mxu0 %v1807
        %1825 = vmatprep.subr.bf16.mxu0 0
        %1826 = vmatpush1.bf16.msra.mxu0 %v1808
        %1827 = vmatprep.subr.bf16.mxu0 0
        %1828 = vmatpush1.bf16.msra.mxu0 %v1809
        %1829 = vmatprep.subr.bf16.mxu0 0
        %1830 = vmatpush1.bf16.msra.mxu0 %v1810
        %1831 = vmatprep.subr.bf16.mxu0 0
        %1832 = vmatpush1.bf16.msra.mxu0 %v1811
        %1833 = vmatprep.subr.bf16.mxu0 0
        %1834 = vmatpush1.bf16.msra.mxu0 %v1812
        %1835 = vmatprep.subr.bf16.mxu0 0
        %1836 = vmatpush1.bf16.msra.mxu0 %v1813
        %1837 = vmatprep.subr.bf16.mxu0 0
        %1838 = vmatpush1.bf16.msra.mxu0 %v1814
        %1839 = vmatprep.subr.bf16.mxu0 0
        %1840 = vmatpush1.bf16.msra.mxu0 0
        %1841 = vmatprep.subr.bf16.mxu0 0
        %1842 = vmatpush1.bf16.msra.mxu0 0
        %1843 = vmatprep.subr.bf16.mxu0 0
        %1844 = vmatpush1.bf16.msra.mxu0 0
        %1845 = vmatprep.subr.bf16.mxu0 0
        %1846 = vmatpush1.bf16.msra.mxu0 0
        %1847 = vmatprep.subr.bf16.mxu0 0
        %1848 = vmatpush1.bf16.msra.mxu0 0
        %1849 = vmatprep.subr.bf16.mxu0 0
        %1850 = vmatpush1.bf16.msra.mxu0 0
        %1851 = vmatprep.subr.bf16.mxu0 0
        %1852 = vmatpush1.bf16.msra.mxu0 0
        %1853 = vmatprep.subr.bf16.mxu0 0
        %1854 = vmatpush1.bf16.msra.mxu0 0
        %1855 = vmatprep.mubr.bf16.mxu0 0
        %1856 = vmatmul.mubr.bf16.gmra.mrb[0].mxu0 %v1744
        %v1857 = vpop.f32.mrb[0].mxu0
        %v1858 = vadd.f32 %v1773, %v1857
        %v1859 = vpop.f32.mrb[0].mxu0
        %v1860 = vpop.f32.mrb[0].mxu0
        %v1861 = vadd.f32 %v1773, %v1860
        %v1862 = vpop.f32.mrb[0].mxu0
        %1863 = vmatprep.mubr.bf16.mxu0 0
        %1864 = vmatmul.mubr.bf16.gmra.mrb[0].mxu0 %v1745
        %v1865 = vpop.f32.mrb[0].mxu0
        %v1866 = vadd.f32 %v1773, %v1865
        %v1867 = vpop.f32.mrb[0].mxu0
        %v1868 = vpop.f32.mrb[0].mxu0
        %v1869 = vadd.f32 %v1773, %v1868
        %v1870 = vpop.f32.mrb[0].mxu0
        %1871 = vmatprep.mubr.bf16.mxu0 0
        %1872 = vmatmul.mubr.bf16.gmra.mrb[0].mxu0 %v1746
        %v1873 = vpop.f32.mrb[0].mxu0
        %v1874 = vadd.f32 %v1773, %v1873
        %v1875 = vpop.f32.mrb[0].mxu0
        %v1876 = vpop.f32.mrb[0].mxu0
        %v1877 = vadd.f32 %v1773, %v1876
        %v1878 = vpop.f32.mrb[0].mxu0
        %1879 = vmatprep.mubr.bf16.mxu0 0
        %1880 = vmatmul.mubr.bf16.gmra.mrb[0].mxu0 %v1747
        %v1881 = vpop.f32.mrb[0].mxu0
        %v1882 = vadd.f32 %v1773, %v1881
        %v1883 = vpop.f32.mrb[0].mxu0
        %v1884 = vpop.f32.mrb[0].mxu0
        %v1885 = vadd.f32 %v1773, %v1884
        %v1886 = vpop.f32.mrb[0].mxu0
        %1887 = vmatprep.mubr.bf16.mxu0 0
        %1888 = vmatmul.mubr.bf16.gmra.mrb[0].mxu0 %v1748
        %v1889 = vpop.f32.mrb[0].mxu0
        %v1890 = vadd.f32 %v1773, %v1889
        %v1891 = vpop.f32.mrb[0].mxu0
        %v1892 = vpop.f32.mrb[0].mxu0
        %v1893 = vadd.f32 %v1773, %v1892
        %v1894 = vpop.f32.mrb[0].mxu0
        %1895 = vmatprep.mubr.bf16.mxu0 0
        %1896 = vmatmul.mubr.bf16.gmra.mrb[0].mxu0 %v1749
        %v1897 = vpop.f32.mrb[0].mxu0
        %v1898 = vadd.f32 %v1773, %v1897
        %v1899 = vpop.f32.mrb[0].mxu0
        %v1900 = vpop.f32.mrb[0].mxu0
        %v1901 = vadd.f32 %v1773, %v1900
        %v1902 = vpop.f32.mrb[0].mxu0
        %1903 = vmatprep.mubr.bf16.mxu0 0
        %1904 = vmatmul.mubr.bf16.gmra.mrb[0].mxu0 %v1750
        %v1905 = vpop.f32.mrb[0].mxu0
        %v1906 = vadd.f32 %v1773, %v1905
        %v1907 = vpop.f32.mrb[0].mxu0
        %v1908 = vpop.f32.mrb[0].mxu0
        %v1909 = vadd.f32 %v1773, %v1908
        %v1910 = vpop.f32.mrb[0].mxu0
        %1911 = vmatprep.mubr.bf16.mxu0 0
        %1912 = vmatmul.mubr.bf16.gmra.mrb[0].mxu0 %v1751
        %v1913 = vpop.f32.mrb[0].mxu0
        %v1914 = vadd.f32 %v1773, %v1913
        %v1915 = vpop.f32.mrb[0].mxu0
        %v1916 = vpop.f32.mrb[0].mxu0
        %v1917 = vadd.f32 %v1773, %v1916
        %v1918 = vpop.f32.mrb[0].mxu0
        %1919 = vdwg.mxu0
        %1920 = vst [vmem:[%s569] sm:$0xff] %v1858
        %1921 = vst [vmem:[%s569 + $0x8] sm:$0xff] %v1861
        %1922 = vst [vmem:[%s569 + $0x10] sm:$0xff] %v1866
        %1923 = vst [vmem:[%s569 + $0x18] sm:$0xff] %v1869
        %1924 = vst [vmem:[%s569 + $0x20] sm:$0xff] %v1874
        %1925 = vst [vmem:[%s569 + $0x28] sm:$0xff] %v1877
        %1926 = vst [vmem:[%s569 + $0x30] sm:$0xff] %v1882
        %1927 = vst [vmem:[%s569 + $0x38] sm:$0xff] %v1885
        %1928 = vst [vmem:[%s569 + $0x40] sm:$0xff] %v1890
        %1929 = vst [vmem:[%s569 + $0x48] sm:$0xff] %v1893
        %1930 = vst [vmem:[%s569 + $0x50] sm:$0xff] %v1898
        %1931 = vst [vmem:[%s569 + $0x58] sm:$0xff] %v1901
        %1932 = vst [vmem:[%s569 + $0x60] sm:$0xff] %v1906
        %1933 = vst [vmem:[%s569 + $0x68] sm:$0xff] %v1909
        %1934 = vst [vmem:[%s569 + $0x70] sm:$0xff] %v1914
        %1935 = vst [vmem:[%s569 + $0x78] sm:$0xff] %v1917
        %s1936 = sand.u32 %s365, 1
        %s1937 = scalar_lea.sflag [#allocation4], %s1936
        %s1938 = sand.u32 %s365, 1
        %s1939 = smul.addr %s1938, 128
        %s1940 = scalar_lea.vmem [#allocation11], %s1939
        // Predicated region
        $region101: #{tpu_custom_call.1} parent=79 // pred_check
          %p1941 = pneg %p375
        $region102: #{tpu_custom_call.1} parent=79 // pred_check_branch
          %1943 = sbr.rel (%p1941) target = $region104
        $region103: #{tpu_custom_call.1} parent=79 // pred_region
          %s1944 = smul.u32 16, %s32
          %s1946 = ssub.s32 2048, 2048
          %1947 = vsyncadd %s1937, %s1946
          %s1948 = smul.addr %s1944, 128
          %s1949 = scalar_lea.hbm %s15, %s1948
          %s1950 = sshll.u32 %s1940, 4
          %s1951 = int_to_ptr.vmem [resolvable:$true] %s1950
          %1956 = dma.vmem_to_hbm [thread:$0]  %s1951, 2048, %s1949, %s1937, 128, 128, 8
        $region104: #{tpu_custom_call.1} parent=79 // pred_fallthru
          _
      $region80: #{tpu_custom_call.1} parent=5 // pred_fallthru
        _
      %p1957 = scmp.le.s32.totalorder 2, %s27
      // Predicated region
      $region105: #{tpu_custom_call.1} parent=5 // pred_check
        %p1958 = pneg %p1957
      $region106: #{tpu_custom_call.1} parent=5 // pred_check_branch
        %1960 = sbr.rel (%p1958) target = $region108
      $region107: #{tpu_custom_call.1} parent=5 // pred_region
        %s1961 = ssub.s32 %s27, 2
        // Predicated region
        $region109: #{tpu_custom_call.1} parent=107 // pred_check
          %p1962 = pneg %p381
        $region110: #{tpu_custom_call.1} parent=107 // pred_check_branch
          %1964 = sbr.rel (%p1962) target = $region112
        $region111: #{tpu_custom_call.1} parent=107 // pred_region
          %s1965 = sand.u32 %s366, 1
          %s1966 = scalar_lea.sflag [#allocation4], %s1965
          %s1967 = sand.u32 %s366, 1
          %s1968 = smul.addr %s1967, 128
          %s1969 = scalar_lea.vmem [#allocation11], %s1968
          %1970 = dma.done %s1966, 2048
        $region112: #{tpu_custom_call.1} parent=107 // pred_fallthru
          _
      $region108: #{tpu_custom_call.1} parent=5 // pred_fallthru
        _
    $region6: #{tpu_custom_call.1} parent=1 // loop_footer
      %s31 = sadd.s32 1, %s27
    $region7: #{tpu_custom_call.1} parent=1 // loop_footer_branch
      %26 = sbr.rel target = $region3
    $region8: #{tpu_custom_call.1} parent=1 // loop_exit
      _
    %1971 = vsyncpa [#allocation3], 1
    %s1972 = scalar_lea.sflag [#allocation3], 1
    %1973 = vsyncpa %s1972, 1
    %1974 = vsyncpa [#allocation6], 1
    %1975 = vsyncpa [#allocation9], 1
    %1976 = vsyncpa [#allocation4], 1
    %s1977 = scalar_lea.sflag [#allocation4], 1
    %1978 = vsyncpa %s1977, 1

</llo_original>
